<compile_context>
chip_gen: v7x
topology: tpu7x:2x2x1
jax: 0.10.0
libtpu: 0.0.40
codegen_flags: <defaults>
</compile_context>

<pallas_src>
import math

import jax
import jax.numpy as jnp
from jax.experimental import pallas as pl
from jax.experimental.pallas import tpu as pltpu

NUM_BUCKETS = 32
MAX_DISTANCE = 128

_HALF = NUM_BUCKETS // 2                       # 16
_INV_HALF = 1.0 / _HALF                        # exact (power of two) -> same as /16
_LOG_RANGE = math.log(MAX_DISTANCE / _HALF + 1e-8)
_NUM_BITS = NUM_BUCKETS.bit_length() - 1       # 5
assert (1 << _NUM_BITS) == NUM_BUCKETS


def _bucket_from_rel(rel):
    """int32 relative positions -> int32 bucket indices (mirrors the torch forward)."""
    sign_offset = jnp.where(rel < 0, _HALF, 0).astype(jnp.int32)
    dist = jnp.abs(rel)
    is_small = dist < _HALF
    large = jnp.clip(dist.astype(jnp.float32), float(_HALF), float(MAX_DISTANCE))
    # Keep torch's op order: log(x/16 + eps) / log_range * (half-1).
    # (x * 1/16 == x / 16 exactly; the divide by log_range is kept un-folded so
    #  the saturated dist>=128 case stays on the same side of the trunc boundary.)
    large_bucket = (
        jnp.log(large * _INV_HALF + 1e-8) / _LOG_RANGE * (_HALF - 1)
    ).astype(jnp.int32) + _HALF                # trunc == floor here (arg >= 0)
    bucket = jnp.where(is_small, dist, large_bucket)
    # Lower clamp of torch's clamp(0, 31) is provably redundant (bucket, sign >= 0).
    return jnp.minimum(bucket + sign_offset, NUM_BUCKETS - 1)


def _lookup(rb, w_ref):
    """Embedding lookup w[rb] via a 5-level binary select tree (VPU-only, no gather)."""
    bits = [(rb & (1 << b)) != 0 for b in range(_NUM_BITS)]
    vals = [w_ref[k] for k in range(NUM_BUCKETS)]          # 32 scalar reads from SMEM
    for b in range(_NUM_BITS):
        vals = [
            jnp.where(bits[b], vals[2 * m + 1], vals[2 * m])
            for m in range(len(vals) // 2)
        ]
    return vals[0]


def _rel_pos_bias_kernel(w_ref, out_ref):
    """One (tm, tn) tile of the bias matrix.

    w_ref:   SMEM ref, shape (NUM_BUCKETS,), f32  -- flattened embedding table.
    out_ref: VMEM ref, shape (tm, tn), f32        -- output tile.
    """
    tm, tn = out_ref.shape
    i = pl.program_id(0)
    j = pl.program_id(1)

    base = j * tn - i * tm                 # rel at (row 0, col 0) of this tile
    rel_min = base - (tm - 1)
    rel_max = base + (tn - 1)

    # Toeplitz/saturation fast paths (whole tile is a single constant value):
    #  * rel >= MAX_DISTANCE everywhere  -> one saturated positive bucket
    #  * rel <= -_HALF everywhere        -> bucket + sign_offset always clamps to 31
    all_pos_sat = rel_min >= MAX_DISTANCE
    all_neg_sat = rel_max <= -_HALF
    in_band = jnp.logical_not(jnp.logical_or(all_pos_sat, all_neg_sat))

    def _const_fill(rep_rel):
        # Compute the representative value with the *same* in-kernel formula on a
        # (1,1) array (same EUP log path) so constant tiles are exactly consistent
        # with in-band tiles, then splat.
        rep = jnp.full((1, 1), rep_rel, jnp.int32)
        v = _lookup(_bucket_from_rel(rep), w_ref)
        out_ref[...] = jnp.broadcast_to(v, out_ref.shape)

    @pl.when(all_pos_sat)
    def _():
        _const_fill(MAX_DISTANCE)

    @pl.when(all_neg_sat)
    def _():
        _const_fill(-_HALF)

    @pl.when(in_band)
    def _():
        rel = base + (
            jax.lax.broadcasted_iota(jnp.int32, (tm, tn), 1)
            - jax.lax.broadcasted_iota(jnp.int32, (tm, tn), 0)
        )
        out_ref[...] = _lookup(_bucket_from_rel(rel), w_ref)


def _pick_tile(L, pref, quantum):
    """Largest multiple of `quantum` that divides L and is <= pref; fallback: L itself."""
    best = 0
    d = quantum
    while d <= min(pref, L):
        if L % d == 0:
            best = d
        d += quantum
    return best if best > 0 else L


def relative_position_bias(weight, L, tm=None, tn=None):
    """weight: (NUM_BUCKETS, 1) f32 embedding table. Returns (L, L, 1) f32 (torch-equivalent)."""
    if tn is None:
        tn = _pick_tile(L, 512, 128)                      # lane-dense output tiles
    if tm is None:
        # keep >= 2 grid rows when possible so both v7x TensorCores get work;
        # 128 x 512 f32 tiles keep select-tree temporaries well under VMEM limits.
        tm = _pick_tile(L, min(128, max(8, L // 2)), 8)
    assert L % tm == 0 and L % tn == 0, "L must be divisible by tile sizes"

    w_flat = weight.reshape(-1).astype(jnp.float32)

    out = pl.pallas_call(
        _rel_pos_bias_kernel,
        out_shape=jax.ShapeDtypeStruct((L, L), jnp.float32),
        grid=(L // tm, L // tn),
        in_specs=[pl.BlockSpec(memory_space=pltpu.MemorySpace.SMEM)],
        out_specs=pl.BlockSpec((tm, tn), lambda i, j: (i, j)),
        compiler_params=pltpu.CompilerParams(
            dimension_semantics=("parallel", "parallel")
        ),
    )(w_flat)

    # Trailing embedding dim of size 1 (glue reshape, outside the kernel).
    return out[:, :, None]


def relative_position_bias_ref(weight, L):
    """Pure-JAX reference mirroring the PyTorch forward, for validation."""
    ctx = jnp.arange(L, dtype=jnp.int32)[:, None]
    mem = jnp.arange(L, dtype=jnp.int32)[None, :]
    rb = _bucket_from_rel(mem - ctx)
    return weight.astype(jnp.float32)[rb]                  # (L, L, 1)


def _check(out, weight, L):
    """Validate kernel output against the reference, tolerating 1-ULP log/divide
    differences that can flip a log-bucket by one exactly at a bucket boundary."""
    ctx = jnp.arange(L, dtype=jnp.int32)[:, None]
    mem = jnp.arange(L, dtype=jnp.int32)[None, :]
    rel = mem - ctx
    rb = _bucket_from_rel(rel)
    w = weight[:, 0].astype(jnp.float32)

    assert out.shape == (L, L, 1), out.shape
    assert out.dtype == jnp.float32

    out2 = out[:, :, 0]
    exact = out2 == w[rb]
    near = (out2 == w[jnp.clip(rb + 1, 0, NUM_BUCKETS - 1)]) | (
        out2 == w[jnp.clip(rb - 1, 0, NUM_BUCKETS - 1)]
    )
    small = jnp.abs(rel) < _HALF            # integer buckets: must match exactly
    ok = jnp.where(small, exact, exact | near)
    assert bool(jnp.all(ok)), f"L={L}: kernel deviates by more than one bucket"
    assert float(jnp.mean(exact.astype(jnp.float32))) > 0.5, (
        f"L={L}: too many boundary mismatches vs reference"
    )


if __name__ == "__main__":
    key = jax.random.PRNGKey(0)
    # nn.Embedding default init: N(0, 1), shape (num_buckets, 1).
    weight = jax.random.normal(key, (NUM_BUCKETS, 1), dtype=jnp.float32)

    # L=128 exercises the in-band path only; L=1024 also exercises both
    # constant (saturated-tile) fast paths.
    for L in (128, 1024):
        out = jax.block_until_ready(relative_position_bias(weight, L))
        _check(out, weight, L)

    print("KERNEL_OK")
</pallas_src>

<mosaic_0001>
module attributes {stable_mosaic.version = 11 : i64} {
  func.func @_rel_pos_bias_kernel(%arg0: i32, %arg1: i32, %arg2: memref<32xf32, #tpu.memory_space<smem>>, %arg3: memref<64x128xf32, #tpu.memory_space<vmem>>) attributes {dimension_semantics = [#tpu.dimension_semantics<parallel>, #tpu.dimension_semantics<parallel>], iteration_bounds = array<i64: 2, 1>, scalar_prefetch = 0 : i64, scratch_operands = 0 : i64, tpu.core_type = #tpu.core_type<tc>, window_params = [{transform_indices = @transform_0, window_bounds = array<i64: 32>}, {transform_indices = @transform_1, window_bounds = array<i64: 64, 128>}]} {
    %c128_i32 = arith.constant 128 : i32
    %0 = arith.muli %arg1, %c128_i32 : i32
    %c64_i32 = arith.constant 64 : i32
    %1 = arith.muli %arg0, %c64_i32 : i32
    %2 = arith.subi %0, %1 : i32
    %c63_i32 = arith.constant 63 : i32
    %3 = arith.subi %2, %c63_i32 : i32
    %c127_i32 = arith.constant 127 : i32
    %4 = arith.addi %2, %c127_i32 : i32
    %c128_i32_0 = arith.constant 128 : i32
    %5 = arith.cmpi sge, %3, %c128_i32_0 : i32
    %c-16_i32 = arith.constant -16 : i32
    %6 = arith.cmpi sle, %4, %c-16_i32 : i32
    %7 = arith.ori %5, %6 : i1
    %true = arith.constant true
    %8 = arith.xori %7, %true : i1
    %9 = arith.extui %5 : i1 to i32
    %c0_i32 = arith.constant 0 : i32
    %10 = arith.cmpi ne, %9, %c0_i32 : i32
    scf.if %10 {
      %c128_i32_3 = arith.constant 128 : i32
      %15 = vector.broadcast %c128_i32_3 : i32 to vector<1x1xi32>
      %c0_i32_4 = arith.constant 0 : i32
      %16 = vector.broadcast %c0_i32_4 : i32 to vector<1x1xi32>
      %17 = arith.cmpi slt, %15, %16 : vector<1x1xi32>
      %c16_i32 = arith.constant 16 : i32
      %c0_i32_5 = arith.constant 0 : i32
      %18 = vector.broadcast %c16_i32 : i32 to vector<1x1xi32>
      %19 = vector.broadcast %c0_i32_5 : i32 to vector<1x1xi32>
      %20 = arith.select %17, %18, %19 : vector<1x1xi1>, vector<1x1xi32>
      %21 = math.absi %15 : vector<1x1xi32>
      %c16_i32_6 = arith.constant 16 : i32
      %22 = vector.broadcast %c16_i32_6 : i32 to vector<1x1xi32>
      %23 = arith.cmpi slt, %21, %22 : vector<1x1xi32>
      %24 = arith.sitofp %21 : vector<1x1xi32> to vector<1x1xf32>
      %cst = arith.constant 1.600000e+01 : f32
      %cst_7 = arith.constant 1.280000e+02 : f32
      %25 = vector.broadcast %cst : f32 to vector<1x1xf32>
      %26 = arith.maximumf %25, %24 : vector<1x1xf32>
      %27 = vector.broadcast %cst_7 : f32 to vector<1x1xf32>
      %28 = arith.minimumf %27, %26 : vector<1x1xf32>
      %cst_8 = arith.constant 6.250000e-02 : f32
      %29 = vector.broadcast %cst_8 : f32 to vector<1x1xf32>
      %30 = arith.mulf %28, %29 : vector<1x1xf32>
      %cst_9 = arith.constant 9.99999993E-9 : f32
      %31 = vector.broadcast %cst_9 : f32 to vector<1x1xf32>
      %32 = arith.addf %30, %31 : vector<1x1xf32>
      %33 = math.log %32 : vector<1x1xf32>
      %cst_10 = arith.constant 2.07944155 : f32
      %34 = vector.broadcast %cst_10 : f32 to vector<1x1xf32>
      %35 = arith.divf %33, %34 : vector<1x1xf32>
      %cst_11 = arith.constant 1.500000e+01 : f32
      %36 = vector.broadcast %cst_11 : f32 to vector<1x1xf32>
      %37 = arith.mulf %35, %36 : vector<1x1xf32>
      %38 = arith.fptosi %37 : vector<1x1xf32> to vector<1x1xi32>
      %c16_i32_12 = arith.constant 16 : i32
      %39 = vector.broadcast %c16_i32_12 : i32 to vector<1x1xi32>
      %40 = arith.addi %38, %39 : vector<1x1xi32>
      %41 = arith.select %23, %21, %40 : vector<1x1xi1>, vector<1x1xi32>
      %42 = arith.addi %41, %20 : vector<1x1xi32>
      %c31_i32 = arith.constant 31 : i32
      %43 = vector.broadcast %c31_i32 : i32 to vector<1x1xi32>
      %44 = arith.minsi %42, %43 : vector<1x1xi32>
      %c1_i32 = arith.constant 1 : i32
      %45 = vector.broadcast %c1_i32 : i32 to vector<1x1xi32>
      %46 = arith.andi %44, %45 : vector<1x1xi32>
      %c0_i32_13 = arith.constant 0 : i32
      %47 = vector.broadcast %c0_i32_13 : i32 to vector<1x1xi32>
      %48 = arith.cmpi ne, %46, %47 : vector<1x1xi32>
      %c2_i32 = arith.constant 2 : i32
      %49 = vector.broadcast %c2_i32 : i32 to vector<1x1xi32>
      %50 = arith.andi %44, %49 : vector<1x1xi32>
      %c0_i32_14 = arith.constant 0 : i32
      %51 = vector.broadcast %c0_i32_14 : i32 to vector<1x1xi32>
      %52 = arith.cmpi ne, %50, %51 : vector<1x1xi32>
      %c4_i32 = arith.constant 4 : i32
      %53 = vector.broadcast %c4_i32 : i32 to vector<1x1xi32>
      %54 = arith.andi %44, %53 : vector<1x1xi32>
      %c0_i32_15 = arith.constant 0 : i32
      %55 = vector.broadcast %c0_i32_15 : i32 to vector<1x1xi32>
      %56 = arith.cmpi ne, %54, %55 : vector<1x1xi32>
      %c8_i32 = arith.constant 8 : i32
      %57 = vector.broadcast %c8_i32 : i32 to vector<1x1xi32>
      %58 = arith.andi %44, %57 : vector<1x1xi32>
      %c0_i32_16 = arith.constant 0 : i32
      %59 = vector.broadcast %c0_i32_16 : i32 to vector<1x1xi32>
      %60 = arith.cmpi ne, %58, %59 : vector<1x1xi32>
      %c16_i32_17 = arith.constant 16 : i32
      %61 = vector.broadcast %c16_i32_17 : i32 to vector<1x1xi32>
      %62 = arith.andi %44, %61 : vector<1x1xi32>
      %c0_i32_18 = arith.constant 0 : i32
      %63 = vector.broadcast %c0_i32_18 : i32 to vector<1x1xi32>
      %64 = arith.cmpi ne, %62, %63 : vector<1x1xi32>
      %c0 = arith.constant 0 : index
      %65 = memref.load %arg2[%c0] : memref<32xf32, #tpu.memory_space<smem>>
      %c1 = arith.constant 1 : index
      %66 = memref.load %arg2[%c1] : memref<32xf32, #tpu.memory_space<smem>>
      %c2 = arith.constant 2 : index
      %67 = memref.load %arg2[%c2] : memref<32xf32, #tpu.memory_space<smem>>
      %c3 = arith.constant 3 : index
      %68 = memref.load %arg2[%c3] : memref<32xf32, #tpu.memory_space<smem>>
      %c4 = arith.constant 4 : index
      %69 = memref.load %arg2[%c4] : memref<32xf32, #tpu.memory_space<smem>>
      %c5 = arith.constant 5 : index
      %70 = memref.load %arg2[%c5] : memref<32xf32, #tpu.memory_space<smem>>
      %c6 = arith.constant 6 : index
      %71 = memref.load %arg2[%c6] : memref<32xf32, #tpu.memory_space<smem>>
      %c7 = arith.constant 7 : index
      %72 = memref.load %arg2[%c7] : memref<32xf32, #tpu.memory_space<smem>>
      %c8 = arith.constant 8 : index
      %73 = memref.load %arg2[%c8] : memref<32xf32, #tpu.memory_space<smem>>
      %c9 = arith.constant 9 : index
      %74 = memref.load %arg2[%c9] : memref<32xf32, #tpu.memory_space<smem>>
      %c10 = arith.constant 10 : index
      %75 = memref.load %arg2[%c10] : memref<32xf32, #tpu.memory_space<smem>>
      %c11 = arith.constant 11 : index
      %76 = memref.load %arg2[%c11] : memref<32xf32, #tpu.memory_space<smem>>
      %c12 = arith.constant 12 : index
      %77 = memref.load %arg2[%c12] : memref<32xf32, #tpu.memory_space<smem>>
      %c13 = arith.constant 13 : index
      %78 = memref.load %arg2[%c13] : memref<32xf32, #tpu.memory_space<smem>>
      %c14 = arith.constant 14 : index
      %79 = memref.load %arg2[%c14] : memref<32xf32, #tpu.memory_space<smem>>
      %c15 = arith.constant 15 : index
      %80 = memref.load %arg2[%c15] : memref<32xf32, #tpu.memory_space<smem>>
      %c16 = arith.constant 16 : index
      %81 = memref.load %arg2[%c16] : memref<32xf32, #tpu.memory_space<smem>>
      %c17 = arith.constant 17 : index
      %82 = memref.load %arg2[%c17] : memref<32xf32, #tpu.memory_space<smem>>
      %c18 = arith.constant 18 : index
      %83 = memref.load %arg2[%c18] : memref<32xf32, #tpu.memory_space<smem>>
      %c19 = arith.constant 19 : index
      %84 = memref.load %arg2[%c19] : memref<32xf32, #tpu.memory_space<smem>>
      %c20 = arith.constant 20 : index
      %85 = memref.load %arg2[%c20] : memref<32xf32, #tpu.memory_space<smem>>
      %c21 = arith.constant 21 : index
      %86 = memref.load %arg2[%c21] : memref<32xf32, #tpu.memory_space<smem>>
      %c22 = arith.constant 22 : index
      %87 = memref.load %arg2[%c22] : memref<32xf32, #tpu.memory_space<smem>>
      %c23 = arith.constant 23 : index
      %88 = memref.load %arg2[%c23] : memref<32xf32, #tpu.memory_space<smem>>
      %c24 = arith.constant 24 : index
      %89 = memref.load %arg2[%c24] : memref<32xf32, #tpu.memory_space<smem>>
      %c25 = arith.constant 25 : index
      %90 = memref.load %arg2[%c25] : memref<32xf32, #tpu.memory_space<smem>>
      %c26 = arith.constant 26 : index
      %91 = memref.load %arg2[%c26] : memref<32xf32, #tpu.memory_space<smem>>
      %c27 = arith.constant 27 : index
      %92 = memref.load %arg2[%c27] : memref<32xf32, #tpu.memory_space<smem>>
      %c28 = arith.constant 28 : index
      %93 = memref.load %arg2[%c28] : memref<32xf32, #tpu.memory_space<smem>>
      %c29 = arith.constant 29 : index
      %94 = memref.load %arg2[%c29] : memref<32xf32, #tpu.memory_space<smem>>
      %c30 = arith.constant 30 : index
      %95 = memref.load %arg2[%c30] : memref<32xf32, #tpu.memory_space<smem>>
      %c31 = arith.constant 31 : index
      %96 = memref.load %arg2[%c31] : memref<32xf32, #tpu.memory_space<smem>>
      %97 = vector.broadcast %66 : f32 to vector<1x1xf32>
      %98 = vector.broadcast %65 : f32 to vector<1x1xf32>
      %99 = arith.select %48, %97, %98 : vector<1x1xi1>, vector<1x1xf32>
      %100 = vector.broadcast %68 : f32 to vector<1x1xf32>
      %101 = vector.broadcast %67 : f32 to vector<1x1xf32>
      %102 = arith.select %48, %100, %101 : vector<1x1xi1>, vector<1x1xf32>
      %103 = vector.broadcast %70 : f32 to vector<1x1xf32>
      %104 = vector.broadcast %69 : f32 to vector<1x1xf32>
      %105 = arith.select %48, %103, %104 : vector<1x1xi1>, vector<1x1xf32>
      %106 = vector.broadcast %72 : f32 to vector<1x1xf32>
      %107 = vector.broadcast %71 : f32 to vector<1x1xf32>
      %108 = arith.select %48, %106, %107 : vector<1x1xi1>, vector<1x1xf32>
      %109 = vector.broadcast %74 : f32 to vector<1x1xf32>
      %110 = vector.broadcast %73 : f32 to vector<1x1xf32>
      %111 = arith.select %48, %109, %110 : vector<1x1xi1>, vector<1x1xf32>
      %112 = vector.broadcast %76 : f32 to vector<1x1xf32>
      %113 = vector.broadcast %75 : f32 to vector<1x1xf32>
      %114 = arith.select %48, %112, %113 : vector<1x1xi1>, vector<1x1xf32>
      %115 = vector.broadcast %78 : f32 to vector<1x1xf32>
      %116 = vector.broadcast %77 : f32 to vector<1x1xf32>
      %117 = arith.select %48, %115, %116 : vector<1x1xi1>, vector<1x1xf32>
      %118 = vector.broadcast %80 : f32 to vector<1x1xf32>
      %119 = vector.broadcast %79 : f32 to vector<1x1xf32>
      %120 = arith.select %48, %118, %119 : vector<1x1xi1>, vector<1x1xf32>
      %121 = vector.broadcast %82 : f32 to vector<1x1xf32>
      %122 = vector.broadcast %81 : f32 to vector<1x1xf32>
      %123 = arith.select %48, %121, %122 : vector<1x1xi1>, vector<1x1xf32>
      %124 = vector.broadcast %84 : f32 to vector<1x1xf32>
      %125 = vector.broadcast %83 : f32 to vector<1x1xf32>
      %126 = arith.select %48, %124, %125 : vector<1x1xi1>, vector<1x1xf32>
      %127 = vector.broadcast %86 : f32 to vector<1x1xf32>
      %128 = vector.broadcast %85 : f32 to vector<1x1xf32>
      %129 = arith.select %48, %127, %128 : vector<1x1xi1>, vector<1x1xf32>
      %130 = vector.broadcast %88 : f32 to vector<1x1xf32>
      %131 = vector.broadcast %87 : f32 to vector<1x1xf32>
      %132 = arith.select %48, %130, %131 : vector<1x1xi1>, vector<1x1xf32>
      %133 = vector.broadcast %90 : f32 to vector<1x1xf32>
      %134 = vector.broadcast %89 : f32 to vector<1x1xf32>
      %135 = arith.select %48, %133, %134 : vector<1x1xi1>, vector<1x1xf32>
      %136 = vector.broadcast %92 : f32 to vector<1x1xf32>
      %137 = vector.broadcast %91 : f32 to vector<1x1xf32>
      %138 = arith.select %48, %136, %137 : vector<1x1xi1>, vector<1x1xf32>
      %139 = vector.broadcast %94 : f32 to vector<1x1xf32>
      %140 = vector.broadcast %93 : f32 to vector<1x1xf32>
      %141 = arith.select %48, %139, %140 : vector<1x1xi1>, vector<1x1xf32>
      %142 = vector.broadcast %96 : f32 to vector<1x1xf32>
      %143 = vector.broadcast %95 : f32 to vector<1x1xf32>
      %144 = arith.select %48, %142, %143 : vector<1x1xi1>, vector<1x1xf32>
      %145 = arith.select %52, %102, %99 : vector<1x1xi1>, vector<1x1xf32>
      %146 = arith.select %52, %108, %105 : vector<1x1xi1>, vector<1x1xf32>
      %147 = arith.select %52, %114, %111 : vector<1x1xi1>, vector<1x1xf32>
      %148 = arith.select %52, %120, %117 : vector<1x1xi1>, vector<1x1xf32>
      %149 = arith.select %52, %126, %123 : vector<1x1xi1>, vector<1x1xf32>
      %150 = arith.select %52, %132, %129 : vector<1x1xi1>, vector<1x1xf32>
      %151 = arith.select %52, %138, %135 : vector<1x1xi1>, vector<1x1xf32>
      %152 = arith.select %52, %144, %141 : vector<1x1xi1>, vector<1x1xf32>
      %153 = arith.select %56, %146, %145 : vector<1x1xi1>, vector<1x1xf32>
      %154 = arith.select %56, %148, %147 : vector<1x1xi1>, vector<1x1xf32>
      %155 = arith.select %56, %150, %149 : vector<1x1xi1>, vector<1x1xf32>
      %156 = arith.select %56, %152, %151 : vector<1x1xi1>, vector<1x1xf32>
      %157 = arith.select %60, %154, %153 : vector<1x1xi1>, vector<1x1xf32>
      %158 = arith.select %60, %156, %155 : vector<1x1xi1>, vector<1x1xf32>
      %159 = arith.select %64, %158, %157 : vector<1x1xi1>, vector<1x1xf32>
      %160 = vector.shape_cast %159 : vector<1x1xf32> to vector<1x1xf32>
      %161 = vector.broadcast %160 : vector<1x1xf32> to vector<64x128xf32>
      %c0_19 = arith.constant 0 : index
      %c0_20 = arith.constant 0 : index
      %162 = vector.load %arg3[%c0_19, %c0_20] : memref<64x128xf32, #tpu.memory_space<vmem>>, vector<64x128xf32>
      tpu.vector_store %arg3[%c0_19, %c0_20], %161 {strides = array<i32>} : memref<64x128xf32, #tpu.memory_space<vmem>>, vector<64x128xf32>,
    } else {
    }
    %11 = arith.extui %6 : i1 to i32
    %c0_i32_1 = arith.constant 0 : i32
    %12 = arith.cmpi ne, %11, %c0_i32_1 : i32
    scf.if %12 {
      %c-16_i32_3 = arith.constant -16 : i32
      %15 = vector.broadcast %c-16_i32_3 : i32 to vector<1x1xi32>
      %c0_i32_4 = arith.constant 0 : i32
      %16 = vector.broadcast %c0_i32_4 : i32 to vector<1x1xi32>
      %17 = arith.cmpi slt, %15, %16 : vector<1x1xi32>
      %c16_i32 = arith.constant 16 : i32
      %c0_i32_5 = arith.constant 0 : i32
      %18 = vector.broadcast %c16_i32 : i32 to vector<1x1xi32>
      %19 = vector.broadcast %c0_i32_5 : i32 to vector<1x1xi32>
      %20 = arith.select %17, %18, %19 : vector<1x1xi1>, vector<1x1xi32>
      %21 = math.absi %15 : vector<1x1xi32>
      %c16_i32_6 = arith.constant 16 : i32
      %22 = vector.broadcast %c16_i32_6 : i32 to vector<1x1xi32>
      %23 = arith.cmpi slt, %21, %22 : vector<1x1xi32>
      %24 = arith.sitofp %21 : vector<1x1xi32> to vector<1x1xf32>
      %cst = arith.constant 1.600000e+01 : f32
      %cst_7 = arith.constant 1.280000e+02 : f32
      %25 = vector.broadcast %cst : f32 to vector<1x1xf32>
      %26 = arith.maximumf %25, %24 : vector<1x1xf32>
      %27 = vector.broadcast %cst_7 : f32 to vector<1x1xf32>
      %28 = arith.minimumf %27, %26 : vector<1x1xf32>
      %cst_8 = arith.constant 6.250000e-02 : f32
      %29 = vector.broadcast %cst_8 : f32 to vector<1x1xf32>
      %30 = arith.mulf %28, %29 : vector<1x1xf32>
      %cst_9 = arith.constant 9.99999993E-9 : f32
      %31 = vector.broadcast %cst_9 : f32 to vector<1x1xf32>
      %32 = arith.addf %30, %31 : vector<1x1xf32>
      %33 = math.log %32 : vector<1x1xf32>
      %cst_10 = arith.constant 2.07944155 : f32
      %34 = vector.broadcast %cst_10 : f32 to vector<1x1xf32>
      %35 = arith.divf %33, %34 : vector<1x1xf32>
      %cst_11 = arith.constant 1.500000e+01 : f32
      %36 = vector.broadcast %cst_11 : f32 to vector<1x1xf32>
      %37 = arith.mulf %35, %36 : vector<1x1xf32>
      %38 = arith.fptosi %37 : vector<1x1xf32> to vector<1x1xi32>
      %c16_i32_12 = arith.constant 16 : i32
      %39 = vector.broadcast %c16_i32_12 : i32 to vector<1x1xi32>
      %40 = arith.addi %38, %39 : vector<1x1xi32>
      %41 = arith.select %23, %21, %40 : vector<1x1xi1>, vector<1x1xi32>
      %42 = arith.addi %41, %20 : vector<1x1xi32>
      %c31_i32 = arith.constant 31 : i32
      %43 = vector.broadcast %c31_i32 : i32 to vector<1x1xi32>
      %44 = arith.minsi %42, %43 : vector<1x1xi32>
      %c1_i32 = arith.constant 1 : i32
      %45 = vector.broadcast %c1_i32 : i32 to vector<1x1xi32>
      %46 = arith.andi %44, %45 : vector<1x1xi32>
      %c0_i32_13 = arith.constant 0 : i32
      %47 = vector.broadcast %c0_i32_13 : i32 to vector<1x1xi32>
      %48 = arith.cmpi ne, %46, %47 : vector<1x1xi32>
      %c2_i32 = arith.constant 2 : i32
      %49 = vector.broadcast %c2_i32 : i32 to vector<1x1xi32>
      %50 = arith.andi %44, %49 : vector<1x1xi32>
      %c0_i32_14 = arith.constant 0 : i32
      %51 = vector.broadcast %c0_i32_14 : i32 to vector<1x1xi32>
      %52 = arith.cmpi ne, %50, %51 : vector<1x1xi32>
      %c4_i32 = arith.constant 4 : i32
      %53 = vector.broadcast %c4_i32 : i32 to vector<1x1xi32>
      %54 = arith.andi %44, %53 : vector<1x1xi32>
      %c0_i32_15 = arith.constant 0 : i32
      %55 = vector.broadcast %c0_i32_15 : i32 to vector<1x1xi32>
      %56 = arith.cmpi ne, %54, %55 : vector<1x1xi32>
      %c8_i32 = arith.constant 8 : i32
      %57 = vector.broadcast %c8_i32 : i32 to vector<1x1xi32>
      %58 = arith.andi %44, %57 : vector<1x1xi32>
      %c0_i32_16 = arith.constant 0 : i32
      %59 = vector.broadcast %c0_i32_16 : i32 to vector<1x1xi32>
      %60 = arith.cmpi ne, %58, %59 : vector<1x1xi32>
      %c16_i32_17 = arith.constant 16 : i32
      %61 = vector.broadcast %c16_i32_17 : i32 to vector<1x1xi32>
      %62 = arith.andi %44, %61 : vector<1x1xi32>
      %c0_i32_18 = arith.constant 0 : i32
      %63 = vector.broadcast %c0_i32_18 : i32 to vector<1x1xi32>
      %64 = arith.cmpi ne, %62, %63 : vector<1x1xi32>
      %c0 = arith.constant 0 : index
      %65 = memref.load %arg2[%c0] : memref<32xf32, #tpu.memory_space<smem>>
      %c1 = arith.constant 1 : index
      %66 = memref.load %arg2[%c1] : memref<32xf32, #tpu.memory_space<smem>>
      %c2 = arith.constant 2 : index
      %67 = memref.load %arg2[%c2] : memref<32xf32, #tpu.memory_space<smem>>
      %c3 = arith.constant 3 : index
      %68 = memref.load %arg2[%c3] : memref<32xf32, #tpu.memory_space<smem>>
      %c4 = arith.constant 4 : index
      %69 = memref.load %arg2[%c4] : memref<32xf32, #tpu.memory_space<smem>>
      %c5 = arith.constant 5 : index
      %70 = memref.load %arg2[%c5] : memref<32xf32, #tpu.memory_space<smem>>
      %c6 = arith.constant 6 : index
      %71 = memref.load %arg2[%c6] : memref<32xf32, #tpu.memory_space<smem>>
      %c7 = arith.constant 7 : index
      %72 = memref.load %arg2[%c7] : memref<32xf32, #tpu.memory_space<smem>>
      %c8 = arith.constant 8 : index
      %73 = memref.load %arg2[%c8] : memref<32xf32, #tpu.memory_space<smem>>
      %c9 = arith.constant 9 : index
      %74 = memref.load %arg2[%c9] : memref<32xf32, #tpu.memory_space<smem>>
      %c10 = arith.constant 10 : index
      %75 = memref.load %arg2[%c10] : memref<32xf32, #tpu.memory_space<smem>>
      %c11 = arith.constant 11 : index
      %76 = memref.load %arg2[%c11] : memref<32xf32, #tpu.memory_space<smem>>
      %c12 = arith.constant 12 : index
      %77 = memref.load %arg2[%c12] : memref<32xf32, #tpu.memory_space<smem>>
      %c13 = arith.constant 13 : index
      %78 = memref.load %arg2[%c13] : memref<32xf32, #tpu.memory_space<smem>>
      %c14 = arith.constant 14 : index
      %79 = memref.load %arg2[%c14] : memref<32xf32, #tpu.memory_space<smem>>
      %c15 = arith.constant 15 : index
      %80 = memref.load %arg2[%c15] : memref<32xf32, #tpu.memory_space<smem>>
      %c16 = arith.constant 16 : index
      %81 = memref.load %arg2[%c16] : memref<32xf32, #tpu.memory_space<smem>>
      %c17 = arith.constant 17 : index
      %82 = memref.load %arg2[%c17] : memref<32xf32, #tpu.memory_space<smem>>
      %c18 = arith.constant 18 : index
      %83 = memref.load %arg2[%c18] : memref<32xf32, #tpu.memory_space<smem>>
      %c19 = arith.constant 19 : index
      %84 = memref.load %arg2[%c19] : memref<32xf32, #tpu.memory_space<smem>>
      %c20 = arith.constant 20 : index
      %85 = memref.load %arg2[%c20] : memref<32xf32, #tpu.memory_space<smem>>
      %c21 = arith.constant 21 : index
      %86 = memref.load %arg2[%c21] : memref<32xf32, #tpu.memory_space<smem>>
      %c22 = arith.constant 22 : index
      %87 = memref.load %arg2[%c22] : memref<32xf32, #tpu.memory_space<smem>>
      %c23 = arith.constant 23 : index
      %88 = memref.load %arg2[%c23] : memref<32xf32, #tpu.memory_space<smem>>
      %c24 = arith.constant 24 : index
      %89 = memref.load %arg2[%c24] : memref<32xf32, #tpu.memory_space<smem>>
      %c25 = arith.constant 25 : index
      %90 = memref.load %arg2[%c25] : memref<32xf32, #tpu.memory_space<smem>>
      %c26 = arith.constant 26 : index
      %91 = memref.load %arg2[%c26] : memref<32xf32, #tpu.memory_space<smem>>
      %c27 = arith.constant 27 : index
      %92 = memref.load %arg2[%c27] : memref<32xf32, #tpu.memory_space<smem>>
      %c28 = arith.constant 28 : index
      %93 = memref.load %arg2[%c28] : memref<32xf32, #tpu.memory_space<smem>>
      %c29 = arith.constant 29 : index
      %94 = memref.load %arg2[%c29] : memref<32xf32, #tpu.memory_space<smem>>
      %c30 = arith.constant 30 : index
      %95 = memref.load %arg2[%c30] : memref<32xf32, #tpu.memory_space<smem>>
      %c31 = arith.constant 31 : index
      %96 = memref.load %arg2[%c31] : memref<32xf32, #tpu.memory_space<smem>>
      %97 = vector.broadcast %66 : f32 to vector<1x1xf32>
      %98 = vector.broadcast %65 : f32 to vector<1x1xf32>
      %99 = arith.select %48, %97, %98 : vector<1x1xi1>, vector<1x1xf32>
      %100 = vector.broadcast %68 : f32 to vector<1x1xf32>
      %101 = vector.broadcast %67 : f32 to vector<1x1xf32>
      %102 = arith.select %48, %100, %101 : vector<1x1xi1>, vector<1x1xf32>
      %103 = vector.broadcast %70 : f32 to vector<1x1xf32>
      %104 = vector.broadcast %69 : f32 to vector<1x1xf32>
      %105 = arith.select %48, %103, %104 : vector<1x1xi1>, vector<1x1xf32>
      %106 = vector.broadcast %72 : f32 to vector<1x1xf32>
      %107 = vector.broadcast %71 : f32 to vector<1x1xf32>
      %108 = arith.select %48, %106, %107 : vector<1x1xi1>, vector<1x1xf32>
      %109 = vector.broadcast %74 : f32 to vector<1x1xf32>
      %110 = vector.broadcast %73 : f32 to vector<1x1xf32>
      %111 = arith.select %48, %109, %110 : vector<1x1xi1>, vector<1x1xf32>
      %112 = vector.broadcast %76 : f32 to vector<1x1xf32>
      %113 = vector.broadcast %75 : f32 to vector<1x1xf32>
      %114 = arith.select %48, %112, %113 : vector<1x1xi1>, vector<1x1xf32>
      %115 = vector.broadcast %78 : f32 to vector<1x1xf32>
      %116 = vector.broadcast %77 : f32 to vector<1x1xf32>
      %117 = arith.select %48, %115, %116 : vector<1x1xi1>, vector<1x1xf32>
      %118 = vector.broadcast %80 : f32 to vector<1x1xf32>
      %119 = vector.broadcast %79 : f32 to vector<1x1xf32>
      %120 = arith.select %48, %118, %119 : vector<1x1xi1>, vector<1x1xf32>
      %121 = vector.broadcast %82 : f32 to vector<1x1xf32>
      %122 = vector.broadcast %81 : f32 to vector<1x1xf32>
      %123 = arith.select %48, %121, %122 : vector<1x1xi1>, vector<1x1xf32>
      %124 = vector.broadcast %84 : f32 to vector<1x1xf32>
      %125 = vector.broadcast %83 : f32 to vector<1x1xf32>
      %126 = arith.select %48, %124, %125 : vector<1x1xi1>, vector<1x1xf32>
      %127 = vector.broadcast %86 : f32 to vector<1x1xf32>
      %128 = vector.broadcast %85 : f32 to vector<1x1xf32>
      %129 = arith.select %48, %127, %128 : vector<1x1xi1>, vector<1x1xf32>
      %130 = vector.broadcast %88 : f32 to vector<1x1xf32>
      %131 = vector.broadcast %87 : f32 to vector<1x1xf32>
      %132 = arith.select %48, %130, %131 : vector<1x1xi1>, vector<1x1xf32>
      %133 = vector.broadcast %90 : f32 to vector<1x1xf32>
      %134 = vector.broadcast %89 : f32 to vector<1x1xf32>
      %135 = arith.select %48, %133, %134 : vector<1x1xi1>, vector<1x1xf32>
      %136 = vector.broadcast %92 : f32 to vector<1x1xf32>
      %137 = vector.broadcast %91 : f32 to vector<1x1xf32>
      %138 = arith.select %48, %136, %137 : vector<1x1xi1>, vector<1x1xf32>
      %139 = vector.broadcast %94 : f32 to vector<1x1xf32>
      %140 = vector.broadcast %93 : f32 to vector<1x1xf32>
      %141 = arith.select %48, %139, %140 : vector<1x1xi1>, vector<1x1xf32>
      %142 = vector.broadcast %96 : f32 to vector<1x1xf32>
      %143 = vector.broadcast %95 : f32 to vector<1x1xf32>
      %144 = arith.select %48, %142, %143 : vector<1x1xi1>, vector<1x1xf32>
      %145 = arith.select %52, %102, %99 : vector<1x1xi1>, vector<1x1xf32>
      %146 = arith.select %52, %108, %105 : vector<1x1xi1>, vector<1x1xf32>
      %147 = arith.select %52, %114, %111 : vector<1x1xi1>, vector<1x1xf32>
      %148 = arith.select %52, %120, %117 : vector<1x1xi1>, vector<1x1xf32>
      %149 = arith.select %52, %126, %123 : vector<1x1xi1>, vector<1x1xf32>
      %150 = arith.select %52, %132, %129 : vector<1x1xi1>, vector<1x1xf32>
      %151 = arith.select %52, %138, %135 : vector<1x1xi1>, vector<1x1xf32>
      %152 = arith.select %52, %144, %141 : vector<1x1xi1>, vector<1x1xf32>
      %153 = arith.select %56, %146, %145 : vector<1x1xi1>, vector<1x1xf32>
      %154 = arith.select %56, %148, %147 : vector<1x1xi1>, vector<1x1xf32>
      %155 = arith.select %56, %150, %149 : vector<1x1xi1>, vector<1x1xf32>
      %156 = arith.select %56, %152, %151 : vector<1x1xi1>, vector<1x1xf32>
      %157 = arith.select %60, %154, %153 : vector<1x1xi1>, vector<1x1xf32>
      %158 = arith.select %60, %156, %155 : vector<1x1xi1>, vector<1x1xf32>
      %159 = arith.select %64, %158, %157 : vector<1x1xi1>, vector<1x1xf32>
      %160 = vector.shape_cast %159 : vector<1x1xf32> to vector<1x1xf32>
      %161 = vector.broadcast %160 : vector<1x1xf32> to vector<64x128xf32>
      %c0_19 = arith.constant 0 : index
      %c0_20 = arith.constant 0 : index
      %162 = vector.load %arg3[%c0_19, %c0_20] : memref<64x128xf32, #tpu.memory_space<vmem>>, vector<64x128xf32>
      tpu.vector_store %arg3[%c0_19, %c0_20], %161 {strides = array<i32>} : memref<64x128xf32, #tpu.memory_space<vmem>>, vector<64x128xf32>,
    } else {
    }
    %13 = arith.extui %8 : i1 to i32
    %c0_i32_2 = arith.constant 0 : i32
    %14 = arith.cmpi ne, %13, %c0_i32_2 : i32
    scf.if %14 {
      %15 = tpu.iota {dimensions = array<i32: 1>} : vector<64x128xi32>
      %16 = tpu.iota {dimensions = array<i32: 0>} : vector<64x128xi32>
      %17 = arith.subi %15, %16 : vector<64x128xi32>
      %18 = vector.broadcast %2 : i32 to vector<64x128xi32>
      %19 = arith.addi %18, %17 : vector<64x128xi32>
      %c0_i32_3 = arith.constant 0 : i32
      %20 = vector.broadcast %c0_i32_3 : i32 to vector<64x128xi32>
      %21 = arith.cmpi slt, %19, %20 : vector<64x128xi32>
      %c16_i32 = arith.constant 16 : i32
      %c0_i32_4 = arith.constant 0 : i32
      %22 = vector.broadcast %c16_i32 : i32 to vector<64x128xi32>
      %23 = vector.broadcast %c0_i32_4 : i32 to vector<64x128xi32>
      %24 = arith.select %21, %22, %23 : vector<64x128xi1>, vector<64x128xi32>
      %25 = math.absi %19 : vector<64x128xi32>
      %c16_i32_5 = arith.constant 16 : i32
      %26 = vector.broadcast %c16_i32_5 : i32 to vector<64x128xi32>
      %27 = arith.cmpi slt, %25, %26 : vector<64x128xi32>
      %28 = arith.sitofp %25 : vector<64x128xi32> to vector<64x128xf32>
      %cst = arith.constant 1.600000e+01 : f32
      %cst_6 = arith.constant 1.280000e+02 : f32
      %29 = vector.broadcast %cst : f32 to vector<64x128xf32>
      %30 = arith.maximumf %29, %28 : vector<64x128xf32>
      %31 = vector.broadcast %cst_6 : f32 to vector<64x128xf32>
      %32 = arith.minimumf %31, %30 : vector<64x128xf32>
      %cst_7 = arith.constant 6.250000e-02 : f32
      %33 = vector.broadcast %cst_7 : f32 to vector<64x128xf32>
      %34 = arith.mulf %32, %33 : vector<64x128xf32>
      %cst_8 = arith.constant 9.99999993E-9 : f32
      %35 = vector.broadcast %cst_8 : f32 to vector<64x128xf32>
      %36 = arith.addf %34, %35 : vector<64x128xf32>
      %37 = math.log %36 : vector<64x128xf32>
      %cst_9 = arith.constant 2.07944155 : f32
      %38 = vector.broadcast %cst_9 : f32 to vector<64x128xf32>
      %39 = arith.divf %37, %38 : vector<64x128xf32>
      %cst_10 = arith.constant 1.500000e+01 : f32
      %40 = vector.broadcast %cst_10 : f32 to vector<64x128xf32>
      %41 = arith.mulf %39, %40 : vector<64x128xf32>
      %42 = arith.fptosi %41 : vector<64x128xf32> to vector<64x128xi32>
      %c16_i32_11 = arith.constant 16 : i32
      %43 = vector.broadcast %c16_i32_11 : i32 to vector<64x128xi32>
      %44 = arith.addi %42, %43 : vector<64x128xi32>
      %45 = arith.select %27, %25, %44 : vector<64x128xi1>, vector<64x128xi32>
      %46 = arith.addi %45, %24 : vector<64x128xi32>
      %c31_i32 = arith.constant 31 : i32
      %47 = vector.broadcast %c31_i32 : i32 to vector<64x128xi32>
      %48 = arith.minsi %46, %47 : vector<64x128xi32>
      %c1_i32 = arith.constant 1 : i32
      %49 = vector.broadcast %c1_i32 : i32 to vector<64x128xi32>
      %50 = arith.andi %48, %49 : vector<64x128xi32>
      %c0_i32_12 = arith.constant 0 : i32
      %51 = vector.broadcast %c0_i32_12 : i32 to vector<64x128xi32>
      %52 = arith.cmpi ne, %50, %51 : vector<64x128xi32>
      %c2_i32 = arith.constant 2 : i32
      %53 = vector.broadcast %c2_i32 : i32 to vector<64x128xi32>
      %54 = arith.andi %48, %53 : vector<64x128xi32>
      %c0_i32_13 = arith.constant 0 : i32
      %55 = vector.broadcast %c0_i32_13 : i32 to vector<64x128xi32>
      %56 = arith.cmpi ne, %54, %55 : vector<64x128xi32>
      %c4_i32 = arith.constant 4 : i32
      %57 = vector.broadcast %c4_i32 : i32 to vector<64x128xi32>
      %58 = arith.andi %48, %57 : vector<64x128xi32>
      %c0_i32_14 = arith.constant 0 : i32
      %59 = vector.broadcast %c0_i32_14 : i32 to vector<64x128xi32>
      %60 = arith.cmpi ne, %58, %59 : vector<64x128xi32>
      %c8_i32 = arith.constant 8 : i32
      %61 = vector.broadcast %c8_i32 : i32 to vector<64x128xi32>
      %62 = arith.andi %48, %61 : vector<64x128xi32>
      %c0_i32_15 = arith.constant 0 : i32
      %63 = vector.broadcast %c0_i32_15 : i32 to vector<64x128xi32>
      %64 = arith.cmpi ne, %62, %63 : vector<64x128xi32>
      %c16_i32_16 = arith.constant 16 : i32
      %65 = vector.broadcast %c16_i32_16 : i32 to vector<64x128xi32>
      %66 = arith.andi %48, %65 : vector<64x128xi32>
      %c0_i32_17 = arith.constant 0 : i32
      %67 = vector.broadcast %c0_i32_17 : i32 to vector<64x128xi32>
      %68 = arith.cmpi ne, %66, %67 : vector<64x128xi32>
      %c0 = arith.constant 0 : index
      %69 = memref.load %arg2[%c0] : memref<32xf32, #tpu.memory_space<smem>>
      %c1 = arith.constant 1 : index
      %70 = memref.load %arg2[%c1] : memref<32xf32, #tpu.memory_space<smem>>
      %c2 = arith.constant 2 : index
      %71 = memref.load %arg2[%c2] : memref<32xf32, #tpu.memory_space<smem>>
      %c3 = arith.constant 3 : index
      %72 = memref.load %arg2[%c3] : memref<32xf32, #tpu.memory_space<smem>>
      %c4 = arith.constant 4 : index
      %73 = memref.load %arg2[%c4] : memref<32xf32, #tpu.memory_space<smem>>
      %c5 = arith.constant 5 : index
      %74 = memref.load %arg2[%c5] : memref<32xf32, #tpu.memory_space<smem>>
      %c6 = arith.constant 6 : index
      %75 = memref.load %arg2[%c6] : memref<32xf32, #tpu.memory_space<smem>>
      %c7 = arith.constant 7 : index
      %76 = memref.load %arg2[%c7] : memref<32xf32, #tpu.memory_space<smem>>
      %c8 = arith.constant 8 : index
      %77 = memref.load %arg2[%c8] : memref<32xf32, #tpu.memory_space<smem>>
      %c9 = arith.constant 9 : index
      %78 = memref.load %arg2[%c9] : memref<32xf32, #tpu.memory_space<smem>>
      %c10 = arith.constant 10 : index
      %79 = memref.load %arg2[%c10] : memref<32xf32, #tpu.memory_space<smem>>
      %c11 = arith.constant 11 : index
      %80 = memref.load %arg2[%c11] : memref<32xf32, #tpu.memory_space<smem>>
      %c12 = arith.constant 12 : index
      %81 = memref.load %arg2[%c12] : memref<32xf32, #tpu.memory_space<smem>>
      %c13 = arith.constant 13 : index
      %82 = memref.load %arg2[%c13] : memref<32xf32, #tpu.memory_space<smem>>
      %c14 = arith.constant 14 : index
      %83 = memref.load %arg2[%c14] : memref<32xf32, #tpu.memory_space<smem>>
      %c15 = arith.constant 15 : index
      %84 = memref.load %arg2[%c15] : memref<32xf32, #tpu.memory_space<smem>>
      %c16 = arith.constant 16 : index
      %85 = memref.load %arg2[%c16] : memref<32xf32, #tpu.memory_space<smem>>
      %c17 = arith.constant 17 : index
      %86 = memref.load %arg2[%c17] : memref<32xf32, #tpu.memory_space<smem>>
      %c18 = arith.constant 18 : index
      %87 = memref.load %arg2[%c18] : memref<32xf32, #tpu.memory_space<smem>>
      %c19 = arith.constant 19 : index
      %88 = memref.load %arg2[%c19] : memref<32xf32, #tpu.memory_space<smem>>
      %c20 = arith.constant 20 : index
      %89 = memref.load %arg2[%c20] : memref<32xf32, #tpu.memory_space<smem>>
      %c21 = arith.constant 21 : index
      %90 = memref.load %arg2[%c21] : memref<32xf32, #tpu.memory_space<smem>>
      %c22 = arith.constant 22 : index
      %91 = memref.load %arg2[%c22] : memref<32xf32, #tpu.memory_space<smem>>
      %c23 = arith.constant 23 : index
      %92 = memref.load %arg2[%c23] : memref<32xf32, #tpu.memory_space<smem>>
      %c24 = arith.constant 24 : index
      %93 = memref.load %arg2[%c24] : memref<32xf32, #tpu.memory_space<smem>>
      %c25 = arith.constant 25 : index
      %94 = memref.load %arg2[%c25] : memref<32xf32, #tpu.memory_space<smem>>
      %c26 = arith.constant 26 : index
      %95 = memref.load %arg2[%c26] : memref<32xf32, #tpu.memory_space<smem>>
      %c27 = arith.constant 27 : index
      %96 = memref.load %arg2[%c27] : memref<32xf32, #tpu.memory_space<smem>>
      %c28 = arith.constant 28 : index
      %97 = memref.load %arg2[%c28] : memref<32xf32, #tpu.memory_space<smem>>
      %c29 = arith.constant 29 : index
      %98 = memref.load %arg2[%c29] : memref<32xf32, #tpu.memory_space<smem>>
      %c30 = arith.constant 30 : index
      %99 = memref.load %arg2[%c30] : memref<32xf32, #tpu.memory_space<smem>>
      %c31 = arith.constant 31 : index
      %100 = memref.load %arg2[%c31] : memref<32xf32, #tpu.memory_space<smem>>
      %101 = vector.broadcast %70 : f32 to vector<64x128xf32>
      %102 = vector.broadcast %69 : f32 to vector<64x128xf32>
      %103 = arith.select %52, %101, %102 : vector<64x128xi1>, vector<64x128xf32>
      %104 = vector.broadcast %72 : f32 to vector<64x128xf32>
      %105 = vector.broadcast %71 : f32 to vector<64x128xf32>
      %106 = arith.select %52, %104, %105 : vector<64x128xi1>, vector<64x128xf32>
      %107 = vector.broadcast %74 : f32 to vector<64x128xf32>
      %108 = vector.broadcast %73 : f32 to vector<64x128xf32>
      %109 = arith.select %52, %107, %108 : vector<64x128xi1>, vector<64x128xf32>
      %110 = vector.broadcast %76 : f32 to vector<64x128xf32>
      %111 = vector.broadcast %75 : f32 to vector<64x128xf32>
      %112 = arith.select %52, %110, %111 : vector<64x128xi1>, vector<64x128xf32>
      %113 = vector.broadcast %78 : f32 to vector<64x128xf32>
      %114 = vector.broadcast %77 : f32 to vector<64x128xf32>
      %115 = arith.select %52, %113, %114 : vector<64x128xi1>, vector<64x128xf32>
      %116 = vector.broadcast %80 : f32 to vector<64x128xf32>
      %117 = vector.broadcast %79 : f32 to vector<64x128xf32>
      %118 = arith.select %52, %116, %117 : vector<64x128xi1>, vector<64x128xf32>
      %119 = vector.broadcast %82 : f32 to vector<64x128xf32>
      %120 = vector.broadcast %81 : f32 to vector<64x128xf32>
      %121 = arith.select %52, %119, %120 : vector<64x128xi1>, vector<64x128xf32>
      %122 = vector.broadcast %84 : f32 to vector<64x128xf32>
      %123 = vector.broadcast %83 : f32 to vector<64x128xf32>
      %124 = arith.select %52, %122, %123 : vector<64x128xi1>, vector<64x128xf32>
      %125 = vector.broadcast %86 : f32 to vector<64x128xf32>
      %126 = vector.broadcast %85 : f32 to vector<64x128xf32>
      %127 = arith.select %52, %125, %126 : vector<64x128xi1>, vector<64x128xf32>
      %128 = vector.broadcast %88 : f32 to vector<64x128xf32>
      %129 = vector.broadcast %87 : f32 to vector<64x128xf32>
      %130 = arith.select %52, %128, %129 : vector<64x128xi1>, vector<64x128xf32>
      %131 = vector.broadcast %90 : f32 to vector<64x128xf32>
      %132 = vector.broadcast %89 : f32 to vector<64x128xf32>
      %133 = arith.select %52, %131, %132 : vector<64x128xi1>, vector<64x128xf32>
      %134 = vector.broadcast %92 : f32 to vector<64x128xf32>
      %135 = vector.broadcast %91 : f32 to vector<64x128xf32>
      %136 = arith.select %52, %134, %135 : vector<64x128xi1>, vector<64x128xf32>
      %137 = vector.broadcast %94 : f32 to vector<64x128xf32>
      %138 = vector.broadcast %93 : f32 to vector<64x128xf32>
      %139 = arith.select %52, %137, %138 : vector<64x128xi1>, vector<64x128xf32>
      %140 = vector.broadcast %96 : f32 to vector<64x128xf32>
      %141 = vector.broadcast %95 : f32 to vector<64x128xf32>
      %142 = arith.select %52, %140, %141 : vector<64x128xi1>, vector<64x128xf32>
      %143 = vector.broadcast %98 : f32 to vector<64x128xf32>
      %144 = vector.broadcast %97 : f32 to vector<64x128xf32>
      %145 = arith.select %52, %143, %144 : vector<64x128xi1>, vector<64x128xf32>
      %146 = vector.broadcast %100 : f32 to vector<64x128xf32>
      %147 = vector.broadcast %99 : f32 to vector<64x128xf32>
      %148 = arith.select %52, %146, %147 : vector<64x128xi1>, vector<64x128xf32>
      %149 = arith.select %56, %106, %103 : vector<64x128xi1>, vector<64x128xf32>
      %150 = arith.select %56, %112, %109 : vector<64x128xi1>, vector<64x128xf32>
      %151 = arith.select %56, %118, %115 : vector<64x128xi1>, vector<64x128xf32>
      %152 = arith.select %56, %124, %121 : vector<64x128xi1>, vector<64x128xf32>
      %153 = arith.select %56, %130, %127 : vector<64x128xi1>, vector<64x128xf32>
      %154 = arith.select %56, %136, %133 : vector<64x128xi1>, vector<64x128xf32>
      %155 = arith.select %56, %142, %139 : vector<64x128xi1>, vector<64x128xf32>
      %156 = arith.select %56, %148, %145 : vector<64x128xi1>, vector<64x128xf32>
      %157 = arith.select %60, %150, %149 : vector<64x128xi1>, vector<64x128xf32>
      %158 = arith.select %60, %152, %151 : vector<64x128xi1>, vector<64x128xf32>
      %159 = arith.select %60, %154, %153 : vector<64x128xi1>, vector<64x128xf32>
      %160 = arith.select %60, %156, %155 : vector<64x128xi1>, vector<64x128xf32>
      %161 = arith.select %64, %158, %157 : vector<64x128xi1>, vector<64x128xf32>
      %162 = arith.select %64, %160, %159 : vector<64x128xi1>, vector<64x128xf32>
      %163 = arith.select %68, %162, %161 : vector<64x128xi1>, vector<64x128xf32>
      %c0_18 = arith.constant 0 : index
      %c0_19 = arith.constant 0 : index
      %164 = vector.load %arg3[%c0_18, %c0_19] : memref<64x128xf32, #tpu.memory_space<vmem>>, vector<64x128xf32>
      tpu.vector_store %arg3[%c0_18, %c0_19], %163 {strides = array<i32>} : memref<64x128xf32, #tpu.memory_space<vmem>>, vector<64x128xf32>,
    } else {
    }
    return
  }
  func.func @transform_0(%arg0: i32, %arg1: i32) -> i32 {
    %c0_i32 = arith.constant 0 : i32
    %c0_i32_0 = arith.constant 0 : i32
    return %c0_i32 : i32
  }
  func.func @transform_1(%arg0: i32, %arg1: i32) -> (i32, i32) {
    %c0_i32 = arith.constant 0 : i32
    return %arg0, %arg1 : i32, i32
  }
}

</mosaic_0001>

<llo_original>
// kernel: tpu_custom_call.1
$region0: #{tpu_custom_call.1}
  #allocation0 [shape = 'u32[]', space=smem, size = 0x4, offset = 0x4, fixed_abs, tag = 'smem constant byte address 0x4 - core index']
  #allocation1 [shape = 'u32[144,128]{1,0:T(1,128)}', space=vmem, size = 0x12000, scoped, tag = 'internal scratch']
  %s0 = inlined_call_operand.hbm [shape: f32[32], index: 0, kind: input, shape index: {}]
  %s1 = inlined_call_operand.hbm [shape: f32[128,128], index: 1, kind: output, shape index: {}]
  %s2 = sld [smem:[#allocation0]]
  $region53: #{tpu_custom_call.1} parent=0
    _
  %s4 = ssub.s32 1, %s2
  %s5 = scalar_select 0, %s4, %s2
  $region1: #{tpu_custom_call.1} parent=0
    #allocation2 [shape = 'u8[512]{0}', space=smem, size = 0x200, scoped, tag = 'input window, operand 0, single buffered']
    #allocation3 [shape = 's32[2]{0}', space=sflag, size = 0x8, scoped, tag = 'scoped memory for tpu_custom_call.1']
    #allocation4 [shape = 's32[2]{0}', space=sflag, size = 0x8, scoped, tag = 'scoped memory for tpu_custom_call.1']
    #allocation5 [shape = 'u8[65536]{0}', space=vmem, size = 0x10000, scoped, tag = 'output window, operand 0']
    %6 = vsyncpa [#allocation4], 0
    %7 = vsyncpa [#allocation3], 0
    %s8 = scalar_lea.sflag [#allocation3], 1
    %9 = vsyncpa %s8, 0
    loop: start=0, step=1, limit=4
    $region2: #{tpu_custom_call.1} parent=1 // loop_pre_header
      _
    $region3: #{tpu_custom_call.1} parent=1 // loop_header
      %s11 = sphi 0, %s15
      %p12 = scmp.ge.s32.totalorder %s11, 4
      %s18 = sphi 0, %s30
      %s19 = sphi 0, %s26
      %s20 = sphi 0, %s18
      %s21 = sphi 0, %s19
      %s22 = sphi 0, %s20
      %s23 = sphi 0, %s21
      %s31 = sphi 0, %s31
      %s33 = sphi 0, %s31
      %s34 = sphi 0, %s33
      %s48 = sphi 0, %s34
      %s56 = sphi 0, %s58
      %s59 = sphi 0, %s56
      %s60 = sphi 0, %s59
      %s76 = sphi 0, %s60
    $region4: #{tpu_custom_call.1} parent=1 // loop_header_branch
      %14 = sbr.rel (%p12) target = $region8
    $region5: #{tpu_custom_call.1} parent=1 // loop_body
      %s16 = ssub.s32 %s11, 1
      %s17 = ssub.s32 %s11, 2
      %s24 = sadd.s32 1, %s19
      %p25 = scmp.ge.s32.totalorder %s24, 1
      %s26 = scalar_select %p25, 0, %s24
      %s27 = sadd.s32 1, %s18
      %s28 = scalar_select %p25, %s27, %s18
      %p29 = scmp.ge.s32.totalorder %s28, 2
      %s30 = scalar_select %p29, 0, %s28
      %s32 = sadd.s32 %s31, 1
      %p35 = scmp.eq.s32.totalorder %s11, 1
      %p36 = scmp.ne.s32.totalorder %s31, %s33
      %p37 = scmp.eq.s32.totalorder %s11, 0
      %p38 = por %p36, %p37
      %p39 = scmp.ne.s32.totalorder %s31, %s33
      %p40 = scmp.eq.s32.totalorder %s16, 1
      %p41 = por %p39, %p40
      %p42 = scmp.ne.s32.totalorder %s33, %s34
      %p43 = scmp.eq.s32.totalorder %s16, 0
      %p44 = por %p42, %p43
      %p45 = scmp.ne.s32.totalorder %s33, %s34
      %p46 = scmp.eq.s32.totalorder %s17, 1
      %p47 = por %p45, %p46
      %p49 = scmp.ne.s32.totalorder %s34, %s48
      %p50 = scmp.eq.s32.totalorder %s17, 0
      %p51 = por %p49, %p50
      %s52 = ssub.s32 %s18, %s30
      %s53 = ssub.s32 %s19, %s26
      %s54 = sor.u32 %s52, %s53
      %p55 = scmp.eq.s32.totalorder %s54, 0
      %s57 = sadd.s32 %s56, 1
      %s58 = scalar_select %p55, %s56, %s57
      %p61 = pneg %p55
      %p62 = scmp.eq.s32.totalorder %s11, 1
      %p63 = por %p61, %p62
      %p64 = scmp.ne.s32.totalorder %s56, %s59
      %p65 = scmp.eq.s32.totalorder %s11, 0
      %p66 = por %p64, %p65
      %p67 = scmp.ne.s32.totalorder %s56, %s59
      %p68 = scmp.eq.s32.totalorder %s16, 1
      %p69 = por %p67, %p68
      %p70 = scmp.ne.s32.totalorder %s59, %s60
      %p71 = scmp.eq.s32.totalorder %s16, 0
      %p72 = por %p70, %p71
      %p73 = scmp.ne.s32.totalorder %s59, %s60
      %p74 = scmp.eq.s32.totalorder %s17, 1
      %p75 = por %p73, %p74
      %p77 = scmp.ne.s32.totalorder %s60, %s76
      %p78 = scmp.eq.s32.totalorder %s17, 0
      %p79 = por %p77, %p78
      %p80 = scmp.le.s32.totalorder 1, %s11
      %p81 = scmp.lt.s32.totalorder %s11, 3
      %p82 = pnand %p80, %p81
      %p83 = pneg %p82
      // Predicated region
      $region9: #{tpu_custom_call.1} parent=5 // pred_check
        _
      $region10: #{tpu_custom_call.1} parent=5 // pred_check_branch
        %85 = sbr.rel (%p82) target = $region12
      $region11: #{tpu_custom_call.1} parent=5 // pred_region
        %s86 = ssub.s32 %s11, 1
        // Predicated region
        $region13: #{tpu_custom_call.1} parent=11 // pred_check
          %p87 = pneg %p44
        $region14: #{tpu_custom_call.1} parent=11 // pred_check_branch
          %89 = sbr.rel (%p87) target = $region16
        $region15: #{tpu_custom_call.1} parent=11 // pred_region
          %s91 = ssub.s32 16, 16
          %92 = vsyncadd [#allocation4], %s91
          %95 = dma.hbm_to_smem %s0, 16, [#allocation2], [#allocation4]
        $region16: #{tpu_custom_call.1} parent=11 // pred_fallthru
          _
      $region12: #{tpu_custom_call.1} parent=5 // pred_fallthru
        _
      %p96 = scmp.lt.s32.totalorder %s11, 2
      // Predicated region
      $region17: #{tpu_custom_call.1} parent=5 // pred_check
        %p97 = pneg %p96
      $region18: #{tpu_custom_call.1} parent=5 // pred_check_branch
        %99 = sbr.rel (%p97) target = $region20
      $region19: #{tpu_custom_call.1} parent=5 // pred_region
        _
      $region20: #{tpu_custom_call.1} parent=5 // pred_fallthru
        _
      %p100 = scmp.le.s32.totalorder 1, %s11
      %p101 = scmp.lt.s32.totalorder %s11, 3
      %p102 = pnand %p100, %p101
      %p103 = pneg %p102
      // Predicated region
      $region21: #{tpu_custom_call.1} parent=5 // pred_check
        _
      $region22: #{tpu_custom_call.1} parent=5 // pred_check_branch
        %105 = sbr.rel (%p102) target = $region24
      $region23: #{tpu_custom_call.1} parent=5 // pred_region
        %s106 = ssub.s32 %s11, 1
        // Predicated region
        $region25: #{tpu_custom_call.1} parent=23 // pred_check
          %p107 = pneg %p44
        $region26: #{tpu_custom_call.1} parent=23 // pred_check_branch
          %109 = sbr.rel (%p107) target = $region28
        $region27: #{tpu_custom_call.1} parent=23 // pred_region
          %110 = dma.done [#allocation4], 16
        $region28: #{tpu_custom_call.1} parent=23 // pred_fallthru
          _
        %111 = sfence
        %p112 = pneg %p44
        %p113 = pneg %p41
        %p114 = pneg %p72
        %p115 = pneg %p69
        %s116 = sand.u32 %s59, 1
        %s117 = scalar_lea.sflag [#allocation3], %s116
        %s118 = sand.u32 %s59, 1
        %s119 = smul.addr %s118, 64
        %s120 = scalar_lea.vmem [#allocation5], %s119
        %s121 = smul.u32 8, %s20
        %s122 = smul.u32 %s21, 128
        %s123 = smul.u32 %s20, 64
        %s124 = ssub.s32 %s122, %s123
        %s125 = ssub.s32 %s124, 63
        %s126 = sadd.s32 %s124, 127
        %p127 = scmp.ge.s32.totalorder %s125, 128
        %p128 = scmp.le.s32.totalorder %s126, 4294967280
        %p129 = por %p127, %p128
        %p130 = pneg %p129
        // Predicated region
        $region29: #{tpu_custom_call.1} parent=23 // pred_check
          %p131 = pneg %p127
        $region30: #{tpu_custom_call.1} parent=23 // pred_check_branch
          %133 = sbr.rel (%p131) target = $region32
        $region31: #{tpu_custom_call.1} parent=23 // pred_region
          %s134 = sld [smem:[#allocation2 + $0x1f]]
          %v135 = vstv %s134
          %136 = vst [vmem:[%s120] sm:$0xff] %v135
          %137 = vst [vmem:[%s120 + $0x8] sm:$0xff] %v135
          %138 = vst [vmem:[%s120 + $0x10] sm:$0xff] %v135
          %139 = vst [vmem:[%s120 + $0x18] sm:$0xff] %v135
          %140 = vst [vmem:[%s120 + $0x20] sm:$0xff] %v135
          %141 = vst [vmem:[%s120 + $0x28] sm:$0xff] %v135
          %142 = vst [vmem:[%s120 + $0x30] sm:$0xff] %v135
          %143 = vst [vmem:[%s120 + $0x38] sm:$0xff] %v135
        $region32: #{tpu_custom_call.1} parent=23 // pred_fallthru
          _
        // Predicated region
        $region33: #{tpu_custom_call.1} parent=23 // pred_check
          %p144 = pneg %p128
        $region34: #{tpu_custom_call.1} parent=23 // pred_check_branch
          %146 = sbr.rel (%p144) target = $region36
        $region35: #{tpu_custom_call.1} parent=23 // pred_region
          %s147 = sld [smem:[#allocation2 + $0x1f]]
          %v148 = vstv %s147
          %149 = vst [vmem:[%s120] sm:$0xff] %v148
          %150 = vst [vmem:[%s120 + $0x8] sm:$0xff] %v148
          %151 = vst [vmem:[%s120 + $0x10] sm:$0xff] %v148
          %152 = vst [vmem:[%s120 + $0x18] sm:$0xff] %v148
          %153 = vst [vmem:[%s120 + $0x20] sm:$0xff] %v148
          %154 = vst [vmem:[%s120 + $0x28] sm:$0xff] %v148
          %155 = vst [vmem:[%s120 + $0x30] sm:$0xff] %v148
          %156 = vst [vmem:[%s120 + $0x38] sm:$0xff] %v148
        $region36: #{tpu_custom_call.1} parent=23 // pred_fallthru
          _
        // Predicated region
        $region37: #{tpu_custom_call.1} parent=23 // pred_check
          _
        $region38: #{tpu_custom_call.1} parent=23 // pred_check_branch
          %158 = sbr.rel (%p129) target = $region40
        $region39: #{tpu_custom_call.1} parent=23 // pred_region
          %v159 = vlaneseq
          %v160 = vand.u32 %v159, 127
          %v161 = vlaneseq
          %v162 = vshrl.u32 %v161, 7
          %v163 = vadd.s32 %v162, 8
          %v164 = vadd.s32 %v162, 16
          %v165 = vadd.s32 %v162, 24
          %v166 = vadd.s32 %v162, 32
          %v167 = vadd.s32 %v162, 40
          %v168 = vadd.s32 %v162, 48
          %v169 = vadd.s32 %v162, 56
          %v170 = vsub.s32 %v160, %v162
          %v171 = vsub.s32 %v160, %v163
          %v172 = vsub.s32 %v160, %v164
          %v173 = vsub.s32 %v160, %v165
          %v174 = vsub.s32 %v160, %v166
          %v175 = vsub.s32 %v160, %v167
          %v176 = vsub.s32 %v160, %v168
          %v177 = vsub.s32 %v160, %v169
          %v178 = vstv %s124
          %v179 = vadd.s32 %v178, %v170
          %v180 = vadd.s32 %v178, %v171
          %v181 = vadd.s32 %v178, %v172
          %v182 = vadd.s32 %v178, %v173
          %v183 = vadd.s32 %v178, %v174
          %v184 = vadd.s32 %v178, %v175
          %v185 = vadd.s32 %v178, %v176
          %v186 = vadd.s32 %v178, %v177
          %vm187 = vcmp.lt.s32.totalorder %v179, 0
          %vm188 = vcmp.lt.s32.totalorder %v180, 0
          %vm189 = vcmp.lt.s32.totalorder %v181, 0
          %vm190 = vcmp.lt.s32.totalorder %v182, 0
          %vm191 = vcmp.lt.s32.totalorder %v183, 0
          %vm192 = vcmp.lt.s32.totalorder %v184, 0
          %vm193 = vcmp.lt.s32.totalorder %v185, 0
          %vm194 = vcmp.lt.s32.totalorder %v186, 0
          %v195 = vsel %vm187, 16, 0
          %v196 = vsel %vm188, 16, 0
          %v197 = vsel %vm189, 16, 0
          %v198 = vsel %vm190, 16, 0
          %v199 = vsel %vm191, 16, 0
          %v200 = vsel %vm192, 16, 0
          %v201 = vsel %vm193, 16, 0
          %v202 = vsel %vm194, 16, 0
          %v203 = vsub.s32 0, %v179
          %v204 = vsel %vm187, %v203, %v179
          %v205 = vsub.s32 0, %v180
          %v206 = vsel %vm188, %v205, %v180
          %v207 = vsub.s32 0, %v181
          %v208 = vsel %vm189, %v207, %v181
          %v209 = vsub.s32 0, %v182
          %v210 = vsel %vm190, %v209, %v182
          %v211 = vsub.s32 0, %v183
          %v212 = vsel %vm191, %v211, %v183
          %v213 = vsub.s32 0, %v184
          %v214 = vsel %vm192, %v213, %v184
          %v215 = vsub.s32 0, %v185
          %v216 = vsel %vm193, %v215, %v185
          %v217 = vsub.s32 0, %v186
          %v218 = vsel %vm194, %v217, %v186
          %vm219 = vcmp.lt.s32.totalorder %v204, 16
          %vm220 = vcmp.lt.s32.totalorder %v206, 16
          %vm221 = vcmp.lt.s32.totalorder %v208, 16
          %vm222 = vcmp.lt.s32.totalorder %v210, 16
          %vm223 = vcmp.lt.s32.totalorder %v212, 16
          %vm224 = vcmp.lt.s32.totalorder %v214, 16
          %vm225 = vcmp.lt.s32.totalorder %v216, 16
          %vm226 = vcmp.lt.s32.totalorder %v218, 16
          %v227 = vcvt.s32.f32 %v204
          %v228 = vcvt.s32.f32 %v206
          %v229 = vcvt.s32.f32 %v208
          %v230 = vcvt.s32.f32 %v210
          %v231 = vcvt.s32.f32 %v212
          %v232 = vcvt.s32.f32 %v214
          %v233 = vcvt.s32.f32 %v216
          %v234 = vcvt.s32.f32 %v218
          %v235 = vmax.f32 %v227, 16.0
          %v236 = vmax.f32 %v228, 16.0
          %v237 = vmax.f32 %v229, 16.0
          %v238 = vmax.f32 %v230, 16.0
          %v239 = vmax.f32 %v231, 16.0
          %v240 = vmax.f32 %v232, 16.0
          %v241 = vmax.f32 %v233, 16.0
          %v242 = vmax.f32 %v234, 16.0
          %v243 = vmin.f32 %v235, 128.0
          %v244 = vmin.f32 %v236, 128.0
          %v245 = vmin.f32 %v237, 128.0
          %v246 = vmin.f32 %v238, 128.0
          %v247 = vmin.f32 %v239, 128.0
          %v248 = vmin.f32 %v240, 128.0
          %v249 = vmin.f32 %v241, 128.0
          %v250 = vmin.f32 %v242, 128.0
          %v251 = vmul.f32 %v243, 0.0625
          %v252 = vmul.f32 %v244, 0.0625
          %v253 = vmul.f32 %v245, 0.0625
          %v254 = vmul.f32 %v246, 0.0625
          %v255 = vmul.f32 %v247, 0.0625
          %v256 = vmul.f32 %v248, 0.0625
          %v257 = vmul.f32 %v249, 0.0625
          %v258 = vmul.f32 %v250, 0.0625
          %v259 = vadd.f32 %v251, 1e-08
          %v260 = vadd.f32 %v252, 1e-08
          %v261 = vadd.f32 %v253, 1e-08
          %v262 = vadd.f32 %v254, 1e-08
          %v263 = vadd.f32 %v255, 1e-08
          %v264 = vadd.f32 %v256, 1e-08
          %v265 = vadd.f32 %v257, 1e-08
          %v266 = vadd.f32 %v258, 1e-08
          %v267 = vlog2.pop %v259
          %v268 = vmul.f32 %v267, 0.6931472
          %v269 = vlog2.pop %v260
          %v270 = vmul.f32 %v269, 0.6931472
          %v271 = vlog2.pop %v261
          %v272 = vmul.f32 %v271, 0.6931472
          %v273 = vlog2.pop %v262
          %v274 = vmul.f32 %v273, 0.6931472
          %v275 = vlog2.pop %v263
          %v276 = vmul.f32 %v275, 0.6931472
          %v277 = vlog2.pop %v264
          %v278 = vmul.f32 %v277, 0.6931472
          %v279 = vlog2.pop %v265
          %v280 = vmul.f32 %v279, 0.6931472
          %v281 = vlog2.pop %v266
          %v282 = vmul.f32 %v281, 0.6931472
          %v283 = vrcp.pop 2.0794415
          %v284 = vmul.f32 %v268, %v283
          %v285 = vmul.f32 %v270, %v283
          %v286 = vmul.f32 %v272, %v283
          %v287 = vmul.f32 %v274, %v283
          %v288 = vmul.f32 %v276, %v283
          %v289 = vmul.f32 %v278, %v283
          %v290 = vmul.f32 %v280, %v283
          %v291 = vmul.f32 %v282, %v283
          %v292 = vmul.f32 %v284, 15.0
          %v293 = vmul.f32 %v285, 15.0
          %v294 = vmul.f32 %v286, 15.0
          %v295 = vmul.f32 %v287, 15.0
          %v296 = vmul.f32 %v288, 15.0
          %v297 = vmul.f32 %v289, 15.0
          %v298 = vmul.f32 %v290, 15.0
          %v299 = vmul.f32 %v291, 15.0
          %v300 = vcvt.f32.s32.to.zero.pseudo %v292
          %v301 = vcvt.f32.s32.to.zero.pseudo %v293
          %v302 = vcvt.f32.s32.to.zero.pseudo %v294
          %v303 = vcvt.f32.s32.to.zero.pseudo %v295
          %v304 = vcvt.f32.s32.to.zero.pseudo %v296
          %v305 = vcvt.f32.s32.to.zero.pseudo %v297
          %v306 = vcvt.f32.s32.to.zero.pseudo %v298
          %v307 = vcvt.f32.s32.to.zero.pseudo %v299
          %v308 = vadd.s32 %v300, 16
          %v309 = vadd.s32 %v301, 16
          %v310 = vadd.s32 %v302, 16
          %v311 = vadd.s32 %v303, 16
          %v312 = vadd.s32 %v304, 16
          %v313 = vadd.s32 %v305, 16
          %v314 = vadd.s32 %v306, 16
          %v315 = vadd.s32 %v307, 16
          %v316 = vsel %vm219, %v204, %v308
          %v317 = vsel %vm220, %v206, %v309
          %v318 = vsel %vm221, %v208, %v310
          %v319 = vsel %vm222, %v210, %v311
          %v320 = vsel %vm223, %v212, %v312
          %v321 = vsel %vm224, %v214, %v313
          %v322 = vsel %vm225, %v216, %v314
          %v323 = vsel %vm226, %v218, %v315
          %v324 = vadd.s32 %v316, %v195
          %v325 = vadd.s32 %v317, %v196
          %v326 = vadd.s32 %v318, %v197
          %v327 = vadd.s32 %v319, %v198
          %v328 = vadd.s32 %v320, %v199
          %v329 = vadd.s32 %v321, %v200
          %v330 = vadd.s32 %v322, %v201
          %v331 = vadd.s32 %v323, %v202
          %vm332 = vcmp.lt.s32.totalorder %v324, 31
          %v333 = vsel %vm332, %v324, 31
          %vm334 = vcmp.lt.s32.totalorder %v325, 31
          %v335 = vsel %vm334, %v325, 31
          %vm336 = vcmp.lt.s32.totalorder %v326, 31
          %v337 = vsel %vm336, %v326, 31
          %vm338 = vcmp.lt.s32.totalorder %v327, 31
          %v339 = vsel %vm338, %v327, 31
          %vm340 = vcmp.lt.s32.totalorder %v328, 31
          %v341 = vsel %vm340, %v328, 31
          %vm342 = vcmp.lt.s32.totalorder %v329, 31
          %v343 = vsel %vm342, %v329, 31
          %vm344 = vcmp.lt.s32.totalorder %v330, 31
          %v345 = vsel %vm344, %v330, 31
          %vm346 = vcmp.lt.s32.totalorder %v331, 31
          %v347 = vsel %vm346, %v331, 31
          %v348 = vand.u32 %v333, 1
          %v349 = vand.u32 %v335, 1
          %v350 = vand.u32 %v337, 1
          %v351 = vand.u32 %v339, 1
          %v352 = vand.u32 %v341, 1
          %v353 = vand.u32 %v343, 1
          %v354 = vand.u32 %v345, 1
          %v355 = vand.u32 %v347, 1
          %vm356 = vcmp.ne.s32.totalorder %v348, 0
          %vm357 = vcmp.ne.s32.totalorder %v349, 0
          %vm358 = vcmp.ne.s32.totalorder %v350, 0
          %vm359 = vcmp.ne.s32.totalorder %v351, 0
          %vm360 = vcmp.ne.s32.totalorder %v352, 0
          %vm361 = vcmp.ne.s32.totalorder %v353, 0
          %vm362 = vcmp.ne.s32.totalorder %v354, 0
          %vm363 = vcmp.ne.s32.totalorder %v355, 0
          %v364 = vand.u32 %v333, 2
          %v365 = vand.u32 %v335, 2
          %v366 = vand.u32 %v337, 2
          %v367 = vand.u32 %v339, 2
          %v368 = vand.u32 %v341, 2
          %v369 = vand.u32 %v343, 2
          %v370 = vand.u32 %v345, 2
          %v371 = vand.u32 %v347, 2
          %vm372 = vcmp.ne.s32.totalorder %v364, 0
          %vm373 = vcmp.ne.s32.totalorder %v365, 0
          %vm374 = vcmp.ne.s32.totalorder %v366, 0
          %vm375 = vcmp.ne.s32.totalorder %v367, 0
          %vm376 = vcmp.ne.s32.totalorder %v368, 0
          %vm377 = vcmp.ne.s32.totalorder %v369, 0
          %vm378 = vcmp.ne.s32.totalorder %v370, 0
          %vm379 = vcmp.ne.s32.totalorder %v371, 0
          %v380 = vand.u32 %v333, 4
          %v381 = vand.u32 %v335, 4
          %v382 = vand.u32 %v337, 4
          %v383 = vand.u32 %v339, 4
          %v384 = vand.u32 %v341, 4
          %v385 = vand.u32 %v343, 4
          %v386 = vand.u32 %v345, 4
          %v387 = vand.u32 %v347, 4
          %vm388 = vcmp.ne.s32.totalorder %v380, 0
          %vm389 = vcmp.ne.s32.totalorder %v381, 0
          %vm390 = vcmp.ne.s32.totalorder %v382, 0
          %vm391 = vcmp.ne.s32.totalorder %v383, 0
          %vm392 = vcmp.ne.s32.totalorder %v384, 0
          %vm393 = vcmp.ne.s32.totalorder %v385, 0
          %vm394 = vcmp.ne.s32.totalorder %v386, 0
          %vm395 = vcmp.ne.s32.totalorder %v387, 0
          %v396 = vand.u32 %v333, 8
          %v397 = vand.u32 %v335, 8
          %v398 = vand.u32 %v337, 8
          %v399 = vand.u32 %v339, 8
          %v400 = vand.u32 %v341, 8
          %v401 = vand.u32 %v343, 8
          %v402 = vand.u32 %v345, 8
          %v403 = vand.u32 %v347, 8
          %vm404 = vcmp.ne.s32.totalorder %v396, 0
          %vm405 = vcmp.ne.s32.totalorder %v397, 0
          %vm406 = vcmp.ne.s32.totalorder %v398, 0
          %vm407 = vcmp.ne.s32.totalorder %v399, 0
          %vm408 = vcmp.ne.s32.totalorder %v400, 0
          %vm409 = vcmp.ne.s32.totalorder %v401, 0
          %vm410 = vcmp.ne.s32.totalorder %v402, 0
          %vm411 = vcmp.ne.s32.totalorder %v403, 0
          %v412 = vand.u32 %v333, 16
          %v413 = vand.u32 %v335, 16
          %v414 = vand.u32 %v337, 16
          %v415 = vand.u32 %v339, 16
          %v416 = vand.u32 %v341, 16
          %v417 = vand.u32 %v343, 16
          %v418 = vand.u32 %v345, 16
          %v419 = vand.u32 %v347, 16
          %vm420 = vcmp.ne.s32.totalorder %v412, 0
          %vm421 = vcmp.ne.s32.totalorder %v413, 0
          %vm422 = vcmp.ne.s32.totalorder %v414, 0
          %vm423 = vcmp.ne.s32.totalorder %v415, 0
          %vm424 = vcmp.ne.s32.totalorder %v416, 0
          %vm425 = vcmp.ne.s32.totalorder %v417, 0
          %vm426 = vcmp.ne.s32.totalorder %v418, 0
          %vm427 = vcmp.ne.s32.totalorder %v419, 0
          %s428 = sld [smem:[#allocation2]]
          %s429 = sld [smem:[#allocation2 + $0x1]]
          %s430 = sld [smem:[#allocation2 + $0x2]]
          %s431 = sld [smem:[#allocation2 + $0x3]]
          %s432 = sld [smem:[#allocation2 + $0x4]]
          %s433 = sld [smem:[#allocation2 + $0x5]]
          %s434 = sld [smem:[#allocation2 + $0x6]]
          %s435 = sld [smem:[#allocation2 + $0x7]]
          %s436 = sld [smem:[#allocation2 + $0x8]]
          %s437 = sld [smem:[#allocation2 + $0x9]]
          %s438 = sld [smem:[#allocation2 + $0xa]]
          %s439 = sld [smem:[#allocation2 + $0xb]]
          %s440 = sld [smem:[#allocation2 + $0xc]]
          %s441 = sld [smem:[#allocation2 + $0xd]]
          %s442 = sld [smem:[#allocation2 + $0xe]]
          %s443 = sld [smem:[#allocation2 + $0xf]]
          %s444 = sld [smem:[#allocation2 + $0x10]]
          %s445 = sld [smem:[#allocation2 + $0x11]]
          %s446 = sld [smem:[#allocation2 + $0x12]]
          %s447 = sld [smem:[#allocation2 + $0x13]]
          %s448 = sld [smem:[#allocation2 + $0x14]]
          %s449 = sld [smem:[#allocation2 + $0x15]]
          %s450 = sld [smem:[#allocation2 + $0x16]]
          %s451 = sld [smem:[#allocation2 + $0x17]]
          %s452 = sld [smem:[#allocation2 + $0x18]]
          %s453 = sld [smem:[#allocation2 + $0x19]]
          %s454 = sld [smem:[#allocation2 + $0x1a]]
          %s455 = sld [smem:[#allocation2 + $0x1b]]
          %s456 = sld [smem:[#allocation2 + $0x1c]]
          %s457 = sld [smem:[#allocation2 + $0x1d]]
          %s458 = sld [smem:[#allocation2 + $0x1e]]
          %s459 = sld [smem:[#allocation2 + $0x1f]]
          %v460 = vstv %s429
          %v461 = vstv %s428
          %v462 = vsel %vm356, %v460, %v461
          %v463 = vsel %vm357, %v460, %v461
          %v464 = vsel %vm358, %v460, %v461
          %v465 = vsel %vm359, %v460, %v461
          %v466 = vsel %vm360, %v460, %v461
          %v467 = vsel %vm361, %v460, %v461
          %v468 = vsel %vm362, %v460, %v461
          %v469 = vsel %vm363, %v460, %v461
          %v470 = vstv %s431
          %v471 = vstv %s430
          %v472 = vsel %vm356, %v470, %v471
          %v473 = vsel %vm357, %v470, %v471
          %v474 = vsel %vm358, %v470, %v471
          %v475 = vsel %vm359, %v470, %v471
          %v476 = vsel %vm360, %v470, %v471
          %v477 = vsel %vm361, %v470, %v471
          %v478 = vsel %vm362, %v470, %v471
          %v479 = vsel %vm363, %v470, %v471
          %v480 = vstv %s433
          %v481 = vstv %s432
          %v482 = vsel %vm356, %v480, %v481
          %v483 = vsel %vm357, %v480, %v481
          %v484 = vsel %vm358, %v480, %v481
          %v485 = vsel %vm359, %v480, %v481
          %v486 = vsel %vm360, %v480, %v481
          %v487 = vsel %vm361, %v480, %v481
          %v488 = vsel %vm362, %v480, %v481
          %v489 = vsel %vm363, %v480, %v481
          %v490 = vstv %s435
          %v491 = vstv %s434
          %v492 = vsel %vm356, %v490, %v491
          %v493 = vsel %vm357, %v490, %v491
          %v494 = vsel %vm358, %v490, %v491
          %v495 = vsel %vm359, %v490, %v491
          %v496 = vsel %vm360, %v490, %v491
          %v497 = vsel %vm361, %v490, %v491
          %v498 = vsel %vm362, %v490, %v491
          %v499 = vsel %vm363, %v490, %v491
          %v500 = vstv %s437
          %v501 = vstv %s436
          %v502 = vsel %vm356, %v500, %v501
          %v503 = vsel %vm357, %v500, %v501
          %v504 = vsel %vm358, %v500, %v501
          %v505 = vsel %vm359, %v500, %v501
          %v506 = vsel %vm360, %v500, %v501
          %v507 = vsel %vm361, %v500, %v501
          %v508 = vsel %vm362, %v500, %v501
          %v509 = vsel %vm363, %v500, %v501
          %v510 = vstv %s439
          %v511 = vstv %s438
          %v512 = vsel %vm356, %v510, %v511
          %v513 = vsel %vm357, %v510, %v511
          %v514 = vsel %vm358, %v510, %v511
          %v515 = vsel %vm359, %v510, %v511
          %v516 = vsel %vm360, %v510, %v511
          %v517 = vsel %vm361, %v510, %v511
          %v518 = vsel %vm362, %v510, %v511
          %v519 = vsel %vm363, %v510, %v511
          %v520 = vstv %s441
          %v521 = vstv %s440
          %v522 = vsel %vm356, %v520, %v521
          %v523 = vsel %vm357, %v520, %v521
          %v524 = vsel %vm358, %v520, %v521
          %v525 = vsel %vm359, %v520, %v521
          %v526 = vsel %vm360, %v520, %v521
          %v527 = vsel %vm361, %v520, %v521
          %v528 = vsel %vm362, %v520, %v521
          %v529 = vsel %vm363, %v520, %v521
          %v530 = vstv %s443
          %v531 = vstv %s442
          %v532 = vsel %vm356, %v530, %v531
          %v533 = vsel %vm357, %v530, %v531
          %v534 = vsel %vm358, %v530, %v531
          %v535 = vsel %vm359, %v530, %v531
          %v536 = vsel %vm360, %v530, %v531
          %v537 = vsel %vm361, %v530, %v531
          %v538 = vsel %vm362, %v530, %v531
          %v539 = vsel %vm363, %v530, %v531
          %v540 = vstv %s445
          %v541 = vstv %s444
          %v542 = vsel %vm356, %v540, %v541
          %v543 = vsel %vm357, %v540, %v541
          %v544 = vsel %vm358, %v540, %v541
          %v545 = vsel %vm359, %v540, %v541
          %v546 = vsel %vm360, %v540, %v541
          %v547 = vsel %vm361, %v540, %v541
          %v548 = vsel %vm362, %v540, %v541
          %v549 = vsel %vm363, %v540, %v541
          %v550 = vstv %s447
          %v551 = vstv %s446
          %v552 = vsel %vm356, %v550, %v551
          %v553 = vsel %vm357, %v550, %v551
          %v554 = vsel %vm358, %v550, %v551
          %v555 = vsel %vm359, %v550, %v551
          %v556 = vsel %vm360, %v550, %v551
          %v557 = vsel %vm361, %v550, %v551
          %v558 = vsel %vm362, %v550, %v551
          %v559 = vsel %vm363, %v550, %v551
          %v560 = vstv %s449
          %v561 = vstv %s448
          %v562 = vsel %vm356, %v560, %v561
          %v563 = vsel %vm357, %v560, %v561
          %v564 = vsel %vm358, %v560, %v561
          %v565 = vsel %vm359, %v560, %v561
          %v566 = vsel %vm360, %v560, %v561
          %v567 = vsel %vm361, %v560, %v561
          %v568 = vsel %vm362, %v560, %v561
          %v569 = vsel %vm363, %v560, %v561
          %v570 = vstv %s451
          %v571 = vstv %s450
          %v572 = vsel %vm356, %v570, %v571
          %v573 = vsel %vm357, %v570, %v571
          %v574 = vsel %vm358, %v570, %v571
          %v575 = vsel %vm359, %v570, %v571
          %v576 = vsel %vm360, %v570, %v571
          %v577 = vsel %vm361, %v570, %v571
          %v578 = vsel %vm362, %v570, %v571
          %v579 = vsel %vm363, %v570, %v571
          %v580 = vstv %s453
          %v581 = vstv %s452
          %v582 = vsel %vm356, %v580, %v581
          %v583 = vsel %vm357, %v580, %v581
          %v584 = vsel %vm358, %v580, %v581
          %v585 = vsel %vm359, %v580, %v581
          %v586 = vsel %vm360, %v580, %v581
          %v587 = vsel %vm361, %v580, %v581
          %v588 = vsel %vm362, %v580, %v581
          %v589 = vsel %vm363, %v580, %v581
          %v590 = vstv %s455
          %v591 = vstv %s454
          %v592 = vsel %vm356, %v590, %v591
          %v593 = vsel %vm357, %v590, %v591
          %v594 = vsel %vm358, %v590, %v591
          %v595 = vsel %vm359, %v590, %v591
          %v596 = vsel %vm360, %v590, %v591
          %v597 = vsel %vm361, %v590, %v591
          %v598 = vsel %vm362, %v590, %v591
          %v599 = vsel %vm363, %v590, %v591
          %v600 = vstv %s457
          %v601 = vstv %s456
          %v602 = vsel %vm356, %v600, %v601
          %v603 = vsel %vm357, %v600, %v601
          %v604 = vsel %vm358, %v600, %v601
          %v605 = vsel %vm359, %v600, %v601
          %v606 = vsel %vm360, %v600, %v601
          %v607 = vsel %vm361, %v600, %v601
          %v608 = vsel %vm362, %v600, %v601
          %v609 = vsel %vm363, %v600, %v601
          %v610 = vstv %s459
          %v611 = vstv %s458
          %v612 = vsel %vm356, %v610, %v611
          %v613 = vsel %vm357, %v610, %v611
          %v614 = vsel %vm358, %v610, %v611
          %v615 = vsel %vm359, %v610, %v611
          %v616 = vsel %vm360, %v610, %v611
          %v617 = vsel %vm361, %v610, %v611
          %v618 = vsel %vm362, %v610, %v611
          %v619 = vsel %vm363, %v610, %v611
          %v620 = vsel %vm372, %v472, %v462
          %v621 = vsel %vm373, %v473, %v463
          %v622 = vsel %vm374, %v474, %v464
          %v623 = vsel %vm375, %v475, %v465
          %v624 = vsel %vm376, %v476, %v466
          %v625 = vsel %vm377, %v477, %v467
          %v626 = vsel %vm378, %v478, %v468
          %v627 = vsel %vm379, %v479, %v469
          %v628 = vsel %vm372, %v492, %v482
          %v629 = vsel %vm373, %v493, %v483
          %v630 = vsel %vm374, %v494, %v484
          %v631 = vsel %vm375, %v495, %v485
          %v632 = vsel %vm376, %v496, %v486
          %v633 = vsel %vm377, %v497, %v487
          %v634 = vsel %vm378, %v498, %v488
          %v635 = vsel %vm379, %v499, %v489
          %v636 = vsel %vm372, %v512, %v502
          %v637 = vsel %vm373, %v513, %v503
          %v638 = vsel %vm374, %v514, %v504
          %v639 = vsel %vm375, %v515, %v505
          %v640 = vsel %vm376, %v516, %v506
          %v641 = vsel %vm377, %v517, %v507
          %v642 = vsel %vm378, %v518, %v508
          %v643 = vsel %vm379, %v519, %v509
          %v644 = vsel %vm372, %v532, %v522
          %v645 = vsel %vm373, %v533, %v523
          %v646 = vsel %vm374, %v534, %v524
          %v647 = vsel %vm375, %v535, %v525
          %v648 = vsel %vm376, %v536, %v526
          %v649 = vsel %vm377, %v537, %v527
          %v650 = vsel %vm378, %v538, %v528
          %v651 = vsel %vm379, %v539, %v529
          %v652 = vsel %vm372, %v552, %v542
          %v653 = vsel %vm373, %v553, %v543
          %v654 = vsel %vm374, %v554, %v544
          %v655 = vsel %vm375, %v555, %v545
          %v656 = vsel %vm376, %v556, %v546
          %v657 = vsel %vm377, %v557, %v547
          %v658 = vsel %vm378, %v558, %v548
          %v659 = vsel %vm379, %v559, %v549
          %v660 = vsel %vm372, %v572, %v562
          %v661 = vsel %vm373, %v573, %v563
          %v662 = vsel %vm374, %v574, %v564
          %v663 = vsel %vm375, %v575, %v565
          %v664 = vsel %vm376, %v576, %v566
          %v665 = vsel %vm377, %v577, %v567
          %v666 = vsel %vm378, %v578, %v568
          %v667 = vsel %vm379, %v579, %v569
          %v668 = vsel %vm372, %v592, %v582
          %v669 = vsel %vm373, %v593, %v583
          %v670 = vsel %vm374, %v594, %v584
          %v671 = vsel %vm375, %v595, %v585
          %v672 = vsel %vm376, %v596, %v586
          %v673 = vsel %vm377, %v597, %v587
          %v674 = vsel %vm378, %v598, %v588
          %v675 = vsel %vm379, %v599, %v589
          %v676 = vsel %vm372, %v612, %v602
          %v677 = vsel %vm373, %v613, %v603
          %v678 = vsel %vm374, %v614, %v604
          %v679 = vsel %vm375, %v615, %v605
          %v680 = vsel %vm376, %v616, %v606
          %v681 = vsel %vm377, %v617, %v607
          %v682 = vsel %vm378, %v618, %v608
          %v683 = vsel %vm379, %v619, %v609
          %v684 = vsel %vm388, %v628, %v620
          %v685 = vsel %vm389, %v629, %v621
          %v686 = vsel %vm390, %v630, %v622
          %v687 = vsel %vm391, %v631, %v623
          %v688 = vsel %vm392, %v632, %v624
          %v689 = vsel %vm393, %v633, %v625
          %v690 = vsel %vm394, %v634, %v626
          %v691 = vsel %vm395, %v635, %v627
          %v692 = vsel %vm388, %v644, %v636
          %v693 = vsel %vm389, %v645, %v637
          %v694 = vsel %vm390, %v646, %v638
          %v695 = vsel %vm391, %v647, %v639
          %v696 = vsel %vm392, %v648, %v640
          %v697 = vsel %vm393, %v649, %v641
          %v698 = vsel %vm394, %v650, %v642
          %v699 = vsel %vm395, %v651, %v643
          %v700 = vsel %vm388, %v660, %v652
          %v701 = vsel %vm389, %v661, %v653
          %v702 = vsel %vm390, %v662, %v654
          %v703 = vsel %vm391, %v663, %v655
          %v704 = vsel %vm392, %v664, %v656
          %v705 = vsel %vm393, %v665, %v657
          %v706 = vsel %vm394, %v666, %v658
          %v707 = vsel %vm395, %v667, %v659
          %v708 = vsel %vm388, %v676, %v668
          %v709 = vsel %vm389, %v677, %v669
          %v710 = vsel %vm390, %v678, %v670
          %v711 = vsel %vm391, %v679, %v671
          %v712 = vsel %vm392, %v680, %v672
          %v713 = vsel %vm393, %v681, %v673
          %v714 = vsel %vm394, %v682, %v674
          %v715 = vsel %vm395, %v683, %v675
          %v716 = vsel %vm404, %v692, %v684
          %v717 = vsel %vm405, %v693, %v685
          %v718 = vsel %vm406, %v694, %v686
          %v719 = vsel %vm407, %v695, %v687
          %v720 = vsel %vm408, %v696, %v688
          %v721 = vsel %vm409, %v697, %v689
          %v722 = vsel %vm410, %v698, %v690
          %v723 = vsel %vm411, %v699, %v691
          %v724 = vsel %vm404, %v708, %v700
          %v725 = vsel %vm405, %v709, %v701
          %v726 = vsel %vm406, %v710, %v702
          %v727 = vsel %vm407, %v711, %v703
          %v728 = vsel %vm408, %v712, %v704
          %v729 = vsel %vm409, %v713, %v705
          %v730 = vsel %vm410, %v714, %v706
          %v731 = vsel %vm411, %v715, %v707
          %v732 = vsel %vm420, %v724, %v716
          %v733 = vsel %vm421, %v725, %v717
          %v734 = vsel %vm422, %v726, %v718
          %v735 = vsel %vm423, %v727, %v719
          %v736 = vsel %vm424, %v728, %v720
          %v737 = vsel %vm425, %v729, %v721
          %v738 = vsel %vm426, %v730, %v722
          %v739 = vsel %vm427, %v731, %v723
          %740 = vst [vmem:[%s120] sm:$0xff] %v732
          %741 = vst [vmem:[%s120 + $0x8] sm:$0xff] %v733
          %742 = vst [vmem:[%s120 + $0x10] sm:$0xff] %v734
          %743 = vst [vmem:[%s120 + $0x18] sm:$0xff] %v735
          %744 = vst [vmem:[%s120 + $0x20] sm:$0xff] %v736
          %745 = vst [vmem:[%s120 + $0x28] sm:$0xff] %v737
          %746 = vst [vmem:[%s120 + $0x30] sm:$0xff] %v738
          %747 = vst [vmem:[%s120 + $0x38] sm:$0xff] %v739
        $region40: #{tpu_custom_call.1} parent=23 // pred_fallthru
          _
        %s748 = sand.u32 %s59, 1
        %s749 = scalar_lea.sflag [#allocation3], %s748
        %s750 = sand.u32 %s59, 1
        %s751 = smul.addr %s750, 64
        %s752 = scalar_lea.vmem [#allocation5], %s751
        // Predicated region
        $region41: #{tpu_custom_call.1} parent=23 // pred_check
          %p753 = pneg %p69
        $region42: #{tpu_custom_call.1} parent=23 // pred_check_branch
          %755 = sbr.rel (%p753) target = $region44
        $region43: #{tpu_custom_call.1} parent=23 // pred_region
          %s756 = smul.u32 8, %s20
          %s758 = ssub.s32 1024, 1024
          %759 = vsyncadd %s749, %s758
          %s760 = sadd.s32 %s21, %s756
          %s761 = smul.addr %s760, 128
          %s762 = scalar_lea.hbm %s1, %s761
          %s763 = sshll.u32 %s752, 4
          %s764 = int_to_ptr.vmem [resolvable:$true] %s763
          %769 = dma.vmem_to_hbm [thread:$0]  %s764, 1024, %s762, %s749, 128, 128, 8
        $region44: #{tpu_custom_call.1} parent=23 // pred_fallthru
          _
      $region24: #{tpu_custom_call.1} parent=5 // pred_fallthru
        _
      %p770 = scmp.le.s32.totalorder 2, %s11
      // Predicated region
      $region45: #{tpu_custom_call.1} parent=5 // pred_check
        %p771 = pneg %p770
      $region46: #{tpu_custom_call.1} parent=5 // pred_check_branch
        %773 = sbr.rel (%p771) target = $region48
      $region47: #{tpu_custom_call.1} parent=5 // pred_region
        %s774 = ssub.s32 %s11, 2
        // Predicated region
        $region49: #{tpu_custom_call.1} parent=47 // pred_check
          %p775 = pneg %p75
        $region50: #{tpu_custom_call.1} parent=47 // pred_check_branch
          %777 = sbr.rel (%p775) target = $region52
        $region51: #{tpu_custom_call.1} parent=47 // pred_region
          %s778 = sand.u32 %s60, 1
          %s779 = scalar_lea.sflag [#allocation3], %s778
          %s780 = sand.u32 %s60, 1
          %s781 = smul.addr %s780, 64
          %s782 = scalar_lea.vmem [#allocation5], %s781
          %783 = dma.done %s779, 1024
        $region52: #{tpu_custom_call.1} parent=47 // pred_fallthru
          _
      $region48: #{tpu_custom_call.1} parent=5 // pred_fallthru
        _
    $region6: #{tpu_custom_call.1} parent=1 // loop_footer
      %s15 = sadd.s32 1, %s11
    $region7: #{tpu_custom_call.1} parent=1 // loop_footer_branch
      %10 = sbr.rel target = $region3
    $region8: #{tpu_custom_call.1} parent=1 // loop_exit
      _
    %784 = vsyncpa [#allocation3], 1
    %s785 = scalar_lea.sflag [#allocation3], 1
    %786 = vsyncpa %s785, 1
    %787 = vsyncpa [#allocation4], 1
    %s788 = scalar_lea.sflag [#allocation4], 1
    %789 = vsyncpa %s788, 1

</llo_original>
